<compile_context>
chip_gen: v5e
topology: v5e:2x2
jax: 0.10.0
libtpu: 0.0.40
codegen_flags: <defaults>
</compile_context>

<pallas_src>
import math

import jax
import jax.numpy as jnp
from jax.experimental import pallas as pl
from jax.experimental.pallas import tpu as pltpu


def _round_up(n, m):
    return ((n + m - 1) // m) * m


def mlp_kernel(x_ref,
               w1_ref, b1_ref,
               w2_ref, b2_ref,
               w3_ref, b3_ref,
               w4_ref, b4_ref,
               w5_ref, b5_ref,
               o_ref):
    # All matmuls: bf16 x bf16 operands, f32 accumulation on the MXU.
    h = jnp.dot(x_ref[...].astype(jnp.bfloat16), w1_ref[...],
                preferred_element_type=jnp.float32)
    h = jnp.maximum(h + b1_ref[...], 0.0)

    h = jnp.dot(h.astype(jnp.bfloat16), w2_ref[...],
                preferred_element_type=jnp.float32)
    h = jnp.maximum(h + b2_ref[...], 0.0)

    h = jnp.dot(h.astype(jnp.bfloat16), w3_ref[...],
                preferred_element_type=jnp.float32)
    h = jnp.maximum(h + b3_ref[...], 0.0)

    h = jnp.dot(h.astype(jnp.bfloat16), w4_ref[...],
                preferred_element_type=jnp.float32)
    h = jnp.maximum(h + b4_ref[...], 0.0)

    # fc_out, lane-dense: w5 is zero-padded to [256, 128]; only column 0 is
    # the real output (sliced outside the kernel).
    out = jnp.dot(h.astype(jnp.bfloat16), w5_ref[...],
                  preferred_element_type=jnp.float32)
    o_ref[...] = (out + b5_ref[...]).astype(o_ref.dtype)


def net_forward(x, params, *, batch_tile=512):
    """Run the 5-layer MLP as one fused Pallas kernel.

    x: [B, num_features] float32
    params: dict with w1..w5 as [in, out] f32, b1..b5 as [1, out] f32
    Returns [B, 1] float32.
    """
    B, F = x.shape
    OUT_PAD = 128                      # lane-dense final layer width
    F_pad = _round_up(F, 128)          # lane-dense fc1 contraction dim

    # Batch tiling: multiple of 8 sublanes, capped at `batch_tile`, batch
    # zero-padded so the grid divides evenly.
    bt = _round_up(min(batch_tile, B), 8)
    B_pad = _round_up(B, bt)

    x_p = x
    if (B_pad, F_pad) != (B, F):
        x_p = jnp.zeros((B_pad, F_pad), x.dtype).at[:B, :F].set(x)

    def prep_w(w, in_pad, out_pad):
        wi, wo = w.shape
        if (wi, wo) != (in_pad, out_pad):
            w = jnp.zeros((in_pad, out_pad), w.dtype).at[:wi, :wo].set(w)
        return w.astype(jnp.bfloat16)

    def prep_b(b, out_pad):
        bo = b.shape[-1]
        if bo != out_pad:
            b = jnp.zeros((1, out_pad), b.dtype).at[:, :bo].set(b)
        return b.astype(jnp.float32)

    w1 = prep_w(params["w1"], F_pad, 128)
    b1 = prep_b(params["b1"], 128)
    w2 = prep_w(params["w2"], 128, 256)
    b2 = prep_b(params["b2"], 256)
    w3 = prep_w(params["w3"], 256, 256)
    b3 = prep_b(params["b3"], 256)
    w4 = prep_w(params["w4"], 256, 256)
    b4 = prep_b(params["b4"], 256)
    w5 = prep_w(params["w5"], 256, OUT_PAD)
    b5 = prep_b(params["b5"], OUT_PAD)

    inputs = (x_p, w1, b1, w2, b2, w3, b3, w4, b4, w5, b5)

    flops = 2 * B_pad * (F_pad * 128 + 128 * 256 + 256 * 256 + 256 * 256
                         + 256 * OUT_PAD)
    bytes_accessed = (
        x_p.size * 4
        + sum(a.size * a.dtype.itemsize
              for a in (w1, w2, w3, w4, w5, b1, b2, b3, b4, b5))
        + B_pad * OUT_PAD * 4)
    cost = pl.CostEstimate(flops=flops, transcendentals=0,
                           bytes_accessed=bytes_accessed)

    def build(single_buffer_weights):
        def const_spec(shape):
            # Weights/biases identical for every batch tile: constant index
            # map; optionally single-buffered (never re-fetched).
            imap = lambda i: (0,) * len(shape)
            if single_buffer_weights:
                return pl.BlockSpec(shape, imap,
                                    pipeline_mode=pl.Buffered(1))
            return pl.BlockSpec(shape, imap)

        return pl.pallas_call(
            mlp_kernel,
            out_shape=jax.ShapeDtypeStruct((B_pad, OUT_PAD), jnp.float32),
            grid_spec=pltpu.PrefetchScalarGridSpec(
                num_scalar_prefetch=0,
                grid=(B_pad // bt,),
                in_specs=[
                    pl.BlockSpec((bt, F_pad), lambda i: (i, 0)),   # x tile
                    const_spec(w1.shape), const_spec(b1.shape),
                    const_spec(w2.shape), const_spec(b2.shape),
                    const_spec(w3.shape), const_spec(b3.shape),
                    const_spec(w4.shape), const_spec(b4.shape),
                    const_spec(w5.shape), const_spec(b5.shape),
                ],
                out_specs=pl.BlockSpec((bt, OUT_PAD), lambda i: (i, 0)),
            ),
            compiler_params=pltpu.CompilerParams(
                dimension_semantics=("parallel",)),
            cost_estimate=cost,
        )

    try:
        out = jax.block_until_ready(build(True)(*inputs))
    except Exception:
        # Fallback: default (double) buffering on weight/bias blocks.
        out = build(False)(*inputs)

    return out[:B, :1]


def init_params(key, num_features):
    """Deterministic init mimicking PyTorch nn.Linear default:
    U(-1/sqrt(fan_in), 1/sqrt(fan_in)) for both weight and bias.
    Weights stored as [in, out] (transpose of PyTorch's [out, in])."""
    sizes = [(num_features, 128), (128, 256), (256, 256), (256, 256), (256, 1)]
    params = {}
    for idx, (fan_in, fan_out) in enumerate(sizes, start=1):
        key, kw, kb = jax.random.split(key, 3)
        bound = 1.0 / math.sqrt(fan_in)
        params[f"w{idx}"] = jax.random.uniform(
            kw, (fan_in, fan_out), jnp.float32, minval=-bound, maxval=bound)
        params[f"b{idx}"] = jax.random.uniform(
            kb, (1, fan_out), jnp.float32, minval=-bound, maxval=bound)
    return params


def net_forward_ref(x, params):
    """Pure-JAX reference matching the kernel numerics (bf16 operands,
    f32 accumulation)."""
    cast = lambda a: a.astype(jnp.bfloat16)
    h = x
    for idx in range(1, 5):
        h = jnp.dot(cast(h), cast(params[f"w{idx}"]),
                    preferred_element_type=jnp.float32) + params[f"b{idx}"]
        h = jnp.maximum(h, 0.0)
    return jnp.dot(cast(h), cast(params["w5"]),
                   preferred_element_type=jnp.float32) + params["b5"]


if __name__ == "__main__":
    key = jax.random.PRNGKey(0)
    k_params, k_x = jax.random.split(key)

    batch = 8
    num_features = 32

    params = init_params(k_params, num_features)
    x = jax.random.normal(k_x, (batch, num_features), dtype=jnp.float32)

    out = net_forward(x, params)
    out = jax.block_until_ready(out)

    ref = net_forward_ref(x, params)
    assert out.shape == (batch, 1), out.shape
    assert jnp.allclose(out, ref, atol=1e-2, rtol=1e-2), (
        float(jnp.max(jnp.abs(out - ref))))

    print("KERNEL_OK")
</pallas_src>

<mosaic_0001>
module attributes {stable_mosaic.version = 11 : i64} {
  func.func @mlp_kernel(%arg0: i32, %arg1: memref<8x128xf32, #tpu.memory_space<vmem>>, %arg2: memref<128x128xbf16, #tpu.memory_space<vmem>>, %arg3: memref<1x128xf32, #tpu.memory_space<vmem>>, %arg4: memref<128x256xbf16, #tpu.memory_space<vmem>>, %arg5: memref<1x256xf32, #tpu.memory_space<vmem>>, %arg6: memref<256x256xbf16, #tpu.memory_space<vmem>>, %arg7: memref<1x256xf32, #tpu.memory_space<vmem>>, %arg8: memref<256x256xbf16, #tpu.memory_space<vmem>>, %arg9: memref<1x256xf32, #tpu.memory_space<vmem>>, %arg10: memref<256x128xbf16, #tpu.memory_space<vmem>>, %arg11: memref<1x128xf32, #tpu.memory_space<vmem>>, %arg12: memref<8x128xf32, #tpu.memory_space<vmem>>) attributes {dimension_semantics = [#tpu.dimension_semantics<parallel>], iteration_bounds = array<i64: 1>, scalar_prefetch = 0 : i64, scratch_operands = 0 : i64, tpu.core_type = #tpu.core_type<tc>, window_params = [{transform_indices = @transform_0, window_bounds = array<i64: 8, 128>}, {pipeline_mode = #tpu.pipeline_mode<synchronous>, transform_indices = @transform_1, window_bounds = array<i64: 128, 128>}, {pipeline_mode = #tpu.pipeline_mode<synchronous>, transform_indices = @transform_2, window_bounds = array<i64: 1, 128>}, {pipeline_mode = #tpu.pipeline_mode<synchronous>, transform_indices = @transform_3, window_bounds = array<i64: 128, 256>}, {pipeline_mode = #tpu.pipeline_mode<synchronous>, transform_indices = @transform_4, window_bounds = array<i64: 1, 256>}, {pipeline_mode = #tpu.pipeline_mode<synchronous>, transform_indices = @transform_5, window_bounds = array<i64: 256, 256>}, {pipeline_mode = #tpu.pipeline_mode<synchronous>, transform_indices = @transform_6, window_bounds = array<i64: 1, 256>}, {pipeline_mode = #tpu.pipeline_mode<synchronous>, transform_indices = @transform_7, window_bounds = array<i64: 256, 256>}, {pipeline_mode = #tpu.pipeline_mode<synchronous>, transform_indices = @transform_8, window_bounds = array<i64: 1, 256>}, {pipeline_mode = #tpu.pipeline_mode<synchronous>, transform_indices = @transform_9, window_bounds = array<i64: 256, 128>}, {pipeline_mode = #tpu.pipeline_mode<synchronous>, transform_indices = @transform_10, window_bounds = array<i64: 1, 128>}, {transform_indices = @transform_11, window_bounds = array<i64: 8, 128>}]} {
    %c0 = arith.constant 0 : index
    %c0_0 = arith.constant 0 : index
    %0 = vector.load %arg1[%c0, %c0_0] : memref<8x128xf32, #tpu.memory_space<vmem>>, vector<8x128xf32>
    %1 = arith.truncf %0 : vector<8x128xf32> to vector<8x128xbf16>
    %c0_1 = arith.constant 0 : index
    %c0_2 = arith.constant 0 : index
    %2 = vector.load %arg2[%c0_1, %c0_2] : memref<128x128xbf16, #tpu.memory_space<vmem>>, vector<128x128xbf16>
    %cst = arith.constant dense<0.000000e+00> : vector<8x128xf32>
    %3 = tpu.matmul %1, %2, %cst {dimension_numbers = #tpu.dot_dimension_numbers<[1], [0], [0], [1], [0, 0, 1, 1], [], []>} : vector<8x128xbf16>, vector<128x128xbf16>, vector<8x128xf32> -> vector<8x128xf32>
    %c0_3 = arith.constant 0 : index
    %c0_4 = arith.constant 0 : index
    %4 = vector.load %arg3[%c0_3, %c0_4] : memref<1x128xf32, #tpu.memory_space<vmem>>, vector<1x128xf32>
    %5 = vector.broadcast %4 : vector<1x128xf32> to vector<8x128xf32>
    %6 = arith.addf %3, %5 : vector<8x128xf32>
    %cst_5 = arith.constant 0.000000e+00 : f32
    %7 = vector.broadcast %cst_5 : f32 to vector<8x128xf32>
    %8 = arith.maximumf %6, %7 : vector<8x128xf32>
    %9 = arith.truncf %8 : vector<8x128xf32> to vector<8x128xbf16>
    %c0_6 = arith.constant 0 : index
    %c0_7 = arith.constant 0 : index
    %10 = vector.load %arg4[%c0_6, %c0_7] : memref<128x256xbf16, #tpu.memory_space<vmem>>, vector<128x256xbf16>
    %cst_8 = arith.constant dense<0.000000e+00> : vector<8x256xf32>
    %11 = tpu.matmul %9, %10, %cst_8 {dimension_numbers = #tpu.dot_dimension_numbers<[1], [0], [0], [1], [0, 0, 1, 1], [], []>} : vector<8x128xbf16>, vector<128x256xbf16>, vector<8x256xf32> -> vector<8x256xf32>
    %c0_9 = arith.constant 0 : index
    %c0_10 = arith.constant 0 : index
    %12 = vector.load %arg5[%c0_9, %c0_10] : memref<1x256xf32, #tpu.memory_space<vmem>>, vector<1x256xf32>
    %13 = vector.broadcast %12 : vector<1x256xf32> to vector<8x256xf32>
    %14 = arith.addf %11, %13 : vector<8x256xf32>
    %cst_11 = arith.constant 0.000000e+00 : f32
    %15 = vector.broadcast %cst_11 : f32 to vector<8x256xf32>
    %16 = arith.maximumf %14, %15 : vector<8x256xf32>
    %17 = arith.truncf %16 : vector<8x256xf32> to vector<8x256xbf16>
    %c0_12 = arith.constant 0 : index
    %c0_13 = arith.constant 0 : index
    %18 = vector.load %arg6[%c0_12, %c0_13] : memref<256x256xbf16, #tpu.memory_space<vmem>>, vector<256x256xbf16>
    %cst_14 = arith.constant dense<0.000000e+00> : vector<8x256xf32>
    %19 = tpu.matmul %17, %18, %cst_14 {dimension_numbers = #tpu.dot_dimension_numbers<[1], [0], [0], [1], [0, 0, 1, 1], [], []>} : vector<8x256xbf16>, vector<256x256xbf16>, vector<8x256xf32> -> vector<8x256xf32>
    %c0_15 = arith.constant 0 : index
    %c0_16 = arith.constant 0 : index
    %20 = vector.load %arg7[%c0_15, %c0_16] : memref<1x256xf32, #tpu.memory_space<vmem>>, vector<1x256xf32>
    %21 = vector.broadcast %20 : vector<1x256xf32> to vector<8x256xf32>
    %22 = arith.addf %19, %21 : vector<8x256xf32>
    %cst_17 = arith.constant 0.000000e+00 : f32
    %23 = vector.broadcast %cst_17 : f32 to vector<8x256xf32>
    %24 = arith.maximumf %22, %23 : vector<8x256xf32>
    %25 = arith.truncf %24 : vector<8x256xf32> to vector<8x256xbf16>
    %c0_18 = arith.constant 0 : index
    %c0_19 = arith.constant 0 : index
    %26 = vector.load %arg8[%c0_18, %c0_19] : memref<256x256xbf16, #tpu.memory_space<vmem>>, vector<256x256xbf16>
    %cst_20 = arith.constant dense<0.000000e+00> : vector<8x256xf32>
    %27 = tpu.matmul %25, %26, %cst_20 {dimension_numbers = #tpu.dot_dimension_numbers<[1], [0], [0], [1], [0, 0, 1, 1], [], []>} : vector<8x256xbf16>, vector<256x256xbf16>, vector<8x256xf32> -> vector<8x256xf32>
    %c0_21 = arith.constant 0 : index
    %c0_22 = arith.constant 0 : index
    %28 = vector.load %arg9[%c0_21, %c0_22] : memref<1x256xf32, #tpu.memory_space<vmem>>, vector<1x256xf32>
    %29 = vector.broadcast %28 : vector<1x256xf32> to vector<8x256xf32>
    %30 = arith.addf %27, %29 : vector<8x256xf32>
    %cst_23 = arith.constant 0.000000e+00 : f32
    %31 = vector.broadcast %cst_23 : f32 to vector<8x256xf32>
    %32 = arith.maximumf %30, %31 : vector<8x256xf32>
    %33 = arith.truncf %32 : vector<8x256xf32> to vector<8x256xbf16>
    %c0_24 = arith.constant 0 : index
    %c0_25 = arith.constant 0 : index
    %34 = vector.load %arg10[%c0_24, %c0_25] : memref<256x128xbf16, #tpu.memory_space<vmem>>, vector<256x128xbf16>
    %cst_26 = arith.constant dense<0.000000e+00> : vector<8x128xf32>
    %35 = tpu.matmul %33, %34, %cst_26 {dimension_numbers = #tpu.dot_dimension_numbers<[1], [0], [0], [1], [0, 0, 1, 1], [], []>} : vector<8x256xbf16>, vector<256x128xbf16>, vector<8x128xf32> -> vector<8x128xf32>
    %c0_27 = arith.constant 0 : index
    %c0_28 = arith.constant 0 : index
    %36 = vector.load %arg11[%c0_27, %c0_28] : memref<1x128xf32, #tpu.memory_space<vmem>>, vector<1x128xf32>
    %37 = vector.broadcast %36 : vector<1x128xf32> to vector<8x128xf32>
    %38 = arith.addf %35, %37 : vector<8x128xf32>
    %c0_29 = arith.constant 0 : index
    %c0_30 = arith.constant 0 : index
    %39 = vector.load %arg12[%c0_29, %c0_30] : memref<8x128xf32, #tpu.memory_space<vmem>>, vector<8x128xf32>
    tpu.vector_store %arg12[%c0_29, %c0_30], %38 {strides = array<i32>} : memref<8x128xf32, #tpu.memory_space<vmem>>, vector<8x128xf32>,
    return
  }
  func.func @transform_0(%arg0: i32) -> (i32, i32) {
    %c0_i32 = arith.constant 0 : i32
    %c0_i32_0 = arith.constant 0 : i32
    return %arg0, %c0_i32 : i32, i32
  }
  func.func @transform_1(%arg0: i32) -> (i32, i32) {
    %c0_i32 = arith.constant 0 : i32
    %c0_i32_0 = arith.constant 0 : i32
    %c0_i32_1 = arith.constant 0 : i32
    return %c0_i32, %c0_i32_0 : i32, i32
  }
  func.func @transform_2(%arg0: i32) -> (i32, i32) {
    %c0_i32 = arith.constant 0 : i32
    %c0_i32_0 = arith.constant 0 : i32
    %c0_i32_1 = arith.constant 0 : i32
    return %c0_i32, %c0_i32_0 : i32, i32
  }
  func.func @transform_3(%arg0: i32) -> (i32, i32) {
    %c0_i32 = arith.constant 0 : i32
    %c0_i32_0 = arith.constant 0 : i32
    %c0_i32_1 = arith.constant 0 : i32
    return %c0_i32, %c0_i32_0 : i32, i32
  }
  func.func @transform_4(%arg0: i32) -> (i32, i32) {
    %c0_i32 = arith.constant 0 : i32
    %c0_i32_0 = arith.constant 0 : i32
    %c0_i32_1 = arith.constant 0 : i32
    return %c0_i32, %c0_i32_0 : i32, i32
  }
  func.func @transform_5(%arg0: i32) -> (i32, i32) {
    %c0_i32 = arith.constant 0 : i32
    %c0_i32_0 = arith.constant 0 : i32
    %c0_i32_1 = arith.constant 0 : i32
    return %c0_i32, %c0_i32_0 : i32, i32
  }
  func.func @transform_6(%arg0: i32) -> (i32, i32) {
    %c0_i32 = arith.constant 0 : i32
    %c0_i32_0 = arith.constant 0 : i32
    %c0_i32_1 = arith.constant 0 : i32
    return %c0_i32, %c0_i32_0 : i32, i32
  }
  func.func @transform_7(%arg0: i32) -> (i32, i32) {
    %c0_i32 = arith.constant 0 : i32
    %c0_i32_0 = arith.constant 0 : i32
    %c0_i32_1 = arith.constant 0 : i32
    return %c0_i32, %c0_i32_0 : i32, i32
  }
  func.func @transform_8(%arg0: i32) -> (i32, i32) {
    %c0_i32 = arith.constant 0 : i32
    %c0_i32_0 = arith.constant 0 : i32
    %c0_i32_1 = arith.constant 0 : i32
    return %c0_i32, %c0_i32_0 : i32, i32
  }
  func.func @transform_9(%arg0: i32) -> (i32, i32) {
    %c0_i32 = arith.constant 0 : i32
    %c0_i32_0 = arith.constant 0 : i32
    %c0_i32_1 = arith.constant 0 : i32
    return %c0_i32, %c0_i32_0 : i32, i32
  }
  func.func @transform_10(%arg0: i32) -> (i32, i32) {
    %c0_i32 = arith.constant 0 : i32
    %c0_i32_0 = arith.constant 0 : i32
    %c0_i32_1 = arith.constant 0 : i32
    return %c0_i32, %c0_i32_0 : i32, i32
  }
  func.func @transform_11(%arg0: i32) -> (i32, i32) {
    %c0_i32 = arith.constant 0 : i32
    %c0_i32_0 = arith.constant 0 : i32
    return %arg0, %c0_i32 : i32, i32
  }
}

module attributes {stable_mosaic.version = 11 : i64} {
  func.func @mlp_kernel(%arg0: i32, %arg1: memref<8x128xf32, #tpu.memory_space<vmem>>, %arg2: memref<128x128xbf16, #tpu.memory_space<vmem>>, %arg3: memref<1x128xf32, #tpu.memory_space<vmem>>, %arg4: memref<128x256xbf16, #tpu.memory_space<vmem>>, %arg5: memref<1x256xf32, #tpu.memory_space<vmem>>, %arg6: memref<256x256xbf16, #tpu.memory_space<vmem>>, %arg7: memref<1x256xf32, #tpu.memory_space<vmem>>, %arg8: memref<256x256xbf16, #tpu.memory_space<vmem>>, %arg9: memref<1x256xf32, #tpu.memory_space<vmem>>, %arg10: memref<256x128xbf16, #tpu.memory_space<vmem>>, %arg11: memref<1x128xf32, #tpu.memory_space<vmem>>, %arg12: memref<8x128xf32, #tpu.memory_space<vmem>>) attributes {dimension_semantics = [#tpu.dimension_semantics<parallel>], iteration_bounds = array<i64: 1>, scalar_prefetch = 0 : i64, scratch_operands = 0 : i64, tpu.core_type = #tpu.core_type<tc>, window_params = [{transform_indices = @transform_0, window_bounds = array<i64: 8, 128>}, {pipeline_mode = #tpu.pipeline_mode<synchronous>, transform_indices = @transform_1, window_bounds = array<i64: 128, 128>}, {pipeline_mode = #tpu.pipeline_mode<synchronous>, transform_indices = @transform_2, window_bounds = array<i64: 1, 128>}, {pipeline_mode = #tpu.pipeline_mode<synchronous>, transform_indices = @transform_3, window_bounds = array<i64: 128, 256>}, {pipeline_mode = #tpu.pipeline_mode<synchronous>, transform_indices = @transform_4, window_bounds = array<i64: 1, 256>}, {pipeline_mode = #tpu.pipeline_mode<synchronous>, transform_indices = @transform_5, window_bounds = array<i64: 256, 256>}, {pipeline_mode = #tpu.pipeline_mode<synchronous>, transform_indices = @transform_6, window_bounds = array<i64: 1, 256>}, {pipeline_mode = #tpu.pipeline_mode<synchronous>, transform_indices = @transform_7, window_bounds = array<i64: 256, 256>}, {pipeline_mode = #tpu.pipeline_mode<synchronous>, transform_indices = @transform_8, window_bounds = array<i64: 1, 256>}, {pipeline_mode = #tpu.pipeline_mode<synchronous>, transform_indices = @transform_9, window_bounds = array<i64: 256, 128>}, {pipeline_mode = #tpu.pipeline_mode<synchronous>, transform_indices = @transform_10, window_bounds = array<i64: 1, 128>}, {transform_indices = @transform_11, window_bounds = array<i64: 8, 128>}]} {
    %c0 = arith.constant 0 : index
    %c0_0 = arith.constant 0 : index
    %0 = vector.load %arg1[%c0, %c0_0] : memref<8x128xf32, #tpu.memory_space<vmem>>, vector<8x128xf32>
    %1 = arith.truncf %0 : vector<8x128xf32> to vector<8x128xbf16>
    %c0_1 = arith.constant 0 : index
    %c0_2 = arith.constant 0 : index
    %2 = vector.load %arg2[%c0_1, %c0_2] : memref<128x128xbf16, #tpu.memory_space<vmem>>, vector<128x128xbf16>
    %cst = arith.constant dense<0.000000e+00> : vector<8x128xf32>
    %3 = tpu.matmul %1, %2, %cst {dimension_numbers = #tpu.dot_dimension_numbers<[1], [0], [0], [1], [0, 0, 1, 1], [], []>} : vector<8x128xbf16>, vector<128x128xbf16>, vector<8x128xf32> -> vector<8x128xf32>
    %c0_3 = arith.constant 0 : index
    %c0_4 = arith.constant 0 : index
    %4 = vector.load %arg3[%c0_3, %c0_4] : memref<1x128xf32, #tpu.memory_space<vmem>>, vector<1x128xf32>
    %5 = vector.broadcast %4 : vector<1x128xf32> to vector<8x128xf32>
    %6 = arith.addf %3, %5 : vector<8x128xf32>
    %cst_5 = arith.constant 0.000000e+00 : f32
    %7 = vector.broadcast %cst_5 : f32 to vector<8x128xf32>
    %8 = arith.maximumf %6, %7 : vector<8x128xf32>
    %9 = arith.truncf %8 : vector<8x128xf32> to vector<8x128xbf16>
    %c0_6 = arith.constant 0 : index
    %c0_7 = arith.constant 0 : index
    %10 = vector.load %arg4[%c0_6, %c0_7] : memref<128x256xbf16, #tpu.memory_space<vmem>>, vector<128x256xbf16>
    %cst_8 = arith.constant dense<0.000000e+00> : vector<8x256xf32>
    %11 = tpu.matmul %9, %10, %cst_8 {dimension_numbers = #tpu.dot_dimension_numbers<[1], [0], [0], [1], [0, 0, 1, 1], [], []>} : vector<8x128xbf16>, vector<128x256xbf16>, vector<8x256xf32> -> vector<8x256xf32>
    %c0_9 = arith.constant 0 : index
    %c0_10 = arith.constant 0 : index
    %12 = vector.load %arg5[%c0_9, %c0_10] : memref<1x256xf32, #tpu.memory_space<vmem>>, vector<1x256xf32>
    %13 = vector.broadcast %12 : vector<1x256xf32> to vector<8x256xf32>
    %14 = arith.addf %11, %13 : vector<8x256xf32>
    %cst_11 = arith.constant 0.000000e+00 : f32
    %15 = vector.broadcast %cst_11 : f32 to vector<8x256xf32>
    %16 = arith.maximumf %14, %15 : vector<8x256xf32>
    %17 = arith.truncf %16 : vector<8x256xf32> to vector<8x256xbf16>
    %c0_12 = arith.constant 0 : index
    %c0_13 = arith.constant 0 : index
    %18 = vector.load %arg6[%c0_12, %c0_13] : memref<256x256xbf16, #tpu.memory_space<vmem>>, vector<256x256xbf16>
    %cst_14 = arith.constant dense<0.000000e+00> : vector<8x256xf32>
    %19 = tpu.matmul %17, %18, %cst_14 {dimension_numbers = #tpu.dot_dimension_numbers<[1], [0], [0], [1], [0, 0, 1, 1], [], []>} : vector<8x256xbf16>, vector<256x256xbf16>, vector<8x256xf32> -> vector<8x256xf32>
    %c0_15 = arith.constant 0 : index
    %c0_16 = arith.constant 0 : index
    %20 = vector.load %arg7[%c0_15, %c0_16] : memref<1x256xf32, #tpu.memory_space<vmem>>, vector<1x256xf32>
    %21 = vector.broadcast %20 : vector<1x256xf32> to vector<8x256xf32>
    %22 = arith.addf %19, %21 : vector<8x256xf32>
    %cst_17 = arith.constant 0.000000e+00 : f32
    %23 = vector.broadcast %cst_17 : f32 to vector<8x256xf32>
    %24 = arith.maximumf %22, %23 : vector<8x256xf32>
    %25 = arith.truncf %24 : vector<8x256xf32> to vector<8x256xbf16>
    %c0_18 = arith.constant 0 : index
    %c0_19 = arith.constant 0 : index
    %26 = vector.load %arg8[%c0_18, %c0_19] : memref<256x256xbf16, #tpu.memory_space<vmem>>, vector<256x256xbf16>
    %cst_20 = arith.constant dense<0.000000e+00> : vector<8x256xf32>
    %27 = tpu.matmul %25, %26, %cst_20 {dimension_numbers = #tpu.dot_dimension_numbers<[1], [0], [0], [1], [0, 0, 1, 1], [], []>} : vector<8x256xbf16>, vector<256x256xbf16>, vector<8x256xf32> -> vector<8x256xf32>
    %c0_21 = arith.constant 0 : index
    %c0_22 = arith.constant 0 : index
    %28 = vector.load %arg9[%c0_21, %c0_22] : memref<1x256xf32, #tpu.memory_space<vmem>>, vector<1x256xf32>
    %29 = vector.broadcast %28 : vector<1x256xf32> to vector<8x256xf32>
    %30 = arith.addf %27, %29 : vector<8x256xf32>
    %cst_23 = arith.constant 0.000000e+00 : f32
    %31 = vector.broadcast %cst_23 : f32 to vector<8x256xf32>
    %32 = arith.maximumf %30, %31 : vector<8x256xf32>
    %33 = arith.truncf %32 : vector<8x256xf32> to vector<8x256xbf16>
    %c0_24 = arith.constant 0 : index
    %c0_25 = arith.constant 0 : index
    %34 = vector.load %arg10[%c0_24, %c0_25] : memref<256x128xbf16, #tpu.memory_space<vmem>>, vector<256x128xbf16>
    %cst_26 = arith.constant dense<0.000000e+00> : vector<8x128xf32>
    %35 = tpu.matmul %33, %34, %cst_26 {dimension_numbers = #tpu.dot_dimension_numbers<[1], [0], [0], [1], [0, 0, 1, 1], [], []>} : vector<8x256xbf16>, vector<256x128xbf16>, vector<8x128xf32> -> vector<8x128xf32>
    %c0_27 = arith.constant 0 : index
    %c0_28 = arith.constant 0 : index
    %36 = vector.load %arg11[%c0_27, %c0_28] : memref<1x128xf32, #tpu.memory_space<vmem>>, vector<1x128xf32>
    %37 = vector.broadcast %36 : vector<1x128xf32> to vector<8x128xf32>
    %38 = arith.addf %35, %37 : vector<8x128xf32>
    %c0_29 = arith.constant 0 : index
    %c0_30 = arith.constant 0 : index
    %39 = vector.load %arg12[%c0_29, %c0_30] : memref<8x128xf32, #tpu.memory_space<vmem>>, vector<8x128xf32>
    tpu.vector_store %arg12[%c0_29, %c0_30], %38 {strides = array<i32>} : memref<8x128xf32, #tpu.memory_space<vmem>>, vector<8x128xf32>,
    return
  }
  func.func @transform_0(%arg0: i32) -> (i32, i32) {
    %c0_i32 = arith.constant 0 : i32
    %c0_i32_0 = arith.constant 0 : i32
    return %arg0, %c0_i32 : i32, i32
  }
  func.func @transform_1(%arg0: i32) -> (i32, i32) {
    %c0_i32 = arith.constant 0 : i32
    %c0_i32_0 = arith.constant 0 : i32
    %c0_i32_1 = arith.constant 0 : i32
    return %c0_i32, %c0_i32_0 : i32, i32
  }
  func.func @transform_2(%arg0: i32) -> (i32, i32) {
    %c0_i32 = arith.constant 0 : i32
    %c0_i32_0 = arith.constant 0 : i32
    %c0_i32_1 = arith.constant 0 : i32
    return %c0_i32, %c0_i32_0 : i32, i32
  }
  func.func @transform_3(%arg0: i32) -> (i32, i32) {
    %c0_i32 = arith.constant 0 : i32
    %c0_i32_0 = arith.constant 0 : i32
    %c0_i32_1 = arith.constant 0 : i32
    return %c0_i32, %c0_i32_0 : i32, i32
  }
  func.func @transform_4(%arg0: i32) -> (i32, i32) {
    %c0_i32 = arith.constant 0 : i32
    %c0_i32_0 = arith.constant 0 : i32
    %c0_i32_1 = arith.constant 0 : i32
    return %c0_i32, %c0_i32_0 : i32, i32
  }
  func.func @transform_5(%arg0: i32) -> (i32, i32) {
    %c0_i32 = arith.constant 0 : i32
    %c0_i32_0 = arith.constant 0 : i32
    %c0_i32_1 = arith.constant 0 : i32
    return %c0_i32, %c0_i32_0 : i32, i32
  }
  func.func @transform_6(%arg0: i32) -> (i32, i32) {
    %c0_i32 = arith.constant 0 : i32
    %c0_i32_0 = arith.constant 0 : i32
    %c0_i32_1 = arith.constant 0 : i32
    return %c0_i32, %c0_i32_0 : i32, i32
  }
  func.func @transform_7(%arg0: i32) -> (i32, i32) {
    %c0_i32 = arith.constant 0 : i32
    %c0_i32_0 = arith.constant 0 : i32
    %c0_i32_1 = arith.constant 0 : i32
    return %c0_i32, %c0_i32_0 : i32, i32
  }
  func.func @transform_8(%arg0: i32) -> (i32, i32) {
    %c0_i32 = arith.constant 0 : i32
    %c0_i32_0 = arith.constant 0 : i32
    %c0_i32_1 = arith.constant 0 : i32
    return %c0_i32, %c0_i32_0 : i32, i32
  }
  func.func @transform_9(%arg0: i32) -> (i32, i32) {
    %c0_i32 = arith.constant 0 : i32
    %c0_i32_0 = arith.constant 0 : i32
    %c0_i32_1 = arith.constant 0 : i32
    return %c0_i32, %c0_i32_0 : i32, i32
  }
  func.func @transform_10(%arg0: i32) -> (i32, i32) {
    %c0_i32 = arith.constant 0 : i32
    %c0_i32_0 = arith.constant 0 : i32
    %c0_i32_1 = arith.constant 0 : i32
    return %c0_i32, %c0_i32_0 : i32, i32
  }
  func.func @transform_11(%arg0: i32) -> (i32, i32) {
    %c0_i32 = arith.constant 0 : i32
    %c0_i32_0 = arith.constant 0 : i32
    return %arg0, %c0_i32 : i32, i32
  }
}

</mosaic_0001>

<llo_original>
// kernel: tpu_custom_call.1
$region0: #{tpu_custom_call.1}
  #allocation0 [shape = 'u32[]', space=smem, size = 0x4, offset = 0x4, fixed_abs, tag = 'smem constant byte address 0x4 - core index']
  #allocation1 [shape = 'u32[72,128]{1,0:T(1,128)}', space=vmem, size = 0x9000, scoped, tag = 'internal scratch']
  %s0 = inlined_call_operand.hbm [shape: f32[8,128], index: 0, kind: input, shape index: {}]
  %s1 = inlined_call_operand.hbm [shape: bf16[128,128], index: 1, kind: input, shape index: {}]
  %s2 = inlined_call_operand.hbm [shape: f32[1,128], index: 2, kind: input, shape index: {}]
  %s3 = inlined_call_operand.hbm [shape: bf16[128,256], index: 3, kind: input, shape index: {}]
  %s4 = inlined_call_operand.vmem [shape: f32[1,256], index: 4, kind: input, shape index: {}]
  %s5 = inlined_call_operand.hbm [shape: bf16[256,256], index: 5, kind: input, shape index: {}]
  %s6 = inlined_call_operand.vmem [shape: f32[1,256], index: 6, kind: input, shape index: {}]
  %s7 = inlined_call_operand.hbm [shape: bf16[256,256], index: 7, kind: input, shape index: {}]
  %s8 = inlined_call_operand.vmem [shape: f32[1,256], index: 8, kind: input, shape index: {}]
  %s9 = inlined_call_operand.hbm [shape: bf16[256,128], index: 9, kind: input, shape index: {}]
  %s10 = inlined_call_operand.vmem [shape: f32[1,128], index: 10, kind: input, shape index: {}]
  %s11 = inlined_call_operand.hbm [shape: f32[8,128], index: 11, kind: output, shape index: {}]
  %s12 = sld [smem:[#allocation0]]
  $region82: #{tpu_custom_call.1} parent=0
    _
  %s14 = ssub.s32 1, %s12
  %s15 = scalar_select 0, %s14, %s12
  $region1: #{tpu_custom_call.1} parent=0
    #allocation2 [shape = 'u8[4096]{0}', space=vmem, size = 0x1000, scoped, tag = 'input window, operand 0, single buffered']
    #allocation3 [shape = 's32[1]{0}', space=sflag, size = 0x4, scoped, tag = 'scoped memory for tpu_custom_call.1']
    #allocation4 [shape = 's32[1]{0}', space=sflag, size = 0x4, scoped, tag = 'scoped memory for tpu_custom_call.1']
    #allocation5 [shape = 'u8[32768]{0}', space=vmem, size = 0x8000, scoped, tag = 'input window, operand 1, single buffered']
    #allocation6 [shape = 's32[1]{0}', space=sflag, size = 0x4, scoped, tag = 'scoped memory for tpu_custom_call.1']
    #allocation7 [shape = 'u8[512]{0}', space=vmem, size = 0x400, scoped, tag = 'input window, operand 2, single buffered']
    #allocation8 [shape = 'u8[65536]{0}', space=vmem, size = 0x10000, scoped, tag = 'input window, operand 3, single buffered']
    #allocation9 [shape = 's32[1]{0}', space=sflag, size = 0x4, scoped, tag = 'scoped memory for tpu_custom_call.1']
    #allocation10 [shape = 'u8[131072]{0}', space=vmem, size = 0x20000, scoped, tag = 'input window, operand 5, single buffered']
    #allocation11 [shape = 'u8[131072]{0}', space=vmem, size = 0x20000, scoped, tag = 'input window, operand 7, single buffered']
    #allocation12 [shape = 's32[1]{0}', space=sflag, size = 0x4, scoped, tag = 'scoped memory for tpu_custom_call.1']
    #allocation13 [shape = 'u8[65536]{0}', space=vmem, size = 0x10000, scoped, tag = 'input window, operand 9, single buffered']
    #allocation14 [shape = 'u8[4096]{0}', space=vmem, size = 0x1000, scoped, tag = 'output window, operand 0, single buffered']
    %16 = vsyncpa [#allocation3], 0
    %17 = vsyncpa [#allocation6], 0
    %18 = vsyncpa [#allocation9], 0
    %19 = vsyncpa [#allocation12], 0
    %20 = vsyncpa [#allocation4], 0
    // Predicated region
    $region2: #{tpu_custom_call.1} parent=1 // pred_check
      _
    $region3: #{tpu_custom_call.1} parent=1 // pred_check_branch
      %22 = sbr.rel (0) target = $region5
    $region4: #{tpu_custom_call.1} parent=1 // pred_region
      %24 = vsyncadd [#allocation3], 0
      %s26 = sshll.u32 %s0, 4
      %s27 = int_to_ptr.hbm [resolvable:$true] %s26
      %s28 = sshll.u32 [#allocation2], 4
      %s29 = int_to_ptr.vmem [resolvable:$true] %s28
      %31 = dma.hbm_to_vmem [thread:$0]  %s27, 128, %s29, [#allocation3]
    $region5: #{tpu_custom_call.1} parent=1 // pred_fallthru
      _
    // Predicated region
    $region6: #{tpu_custom_call.1} parent=1 // pred_check
      _
    $region7: #{tpu_custom_call.1} parent=1 // pred_check_branch
      %33 = sbr.rel (0) target = $region9
    $region8: #{tpu_custom_call.1} parent=1 // pred_region
      %35 = vsyncadd [#allocation6], 0
      %s36 = sshll.u32 %s1, 4
      %s37 = int_to_ptr.hbm [resolvable:$true] %s36
      %s38 = sshll.u32 [#allocation5], 4
      %s39 = int_to_ptr.vmem [resolvable:$true] %s38
      %44 = dma.hbm_to_vmem [thread:$0]  %s37, 1024, %s39, [#allocation6], 64, 64, 4
    $region9: #{tpu_custom_call.1} parent=1 // pred_fallthru
      _
    // Predicated region
    $region10: #{tpu_custom_call.1} parent=1 // pred_check
      _
    $region11: #{tpu_custom_call.1} parent=1 // pred_check_branch
      %46 = sbr.rel (0) target = $region13
    $region12: #{tpu_custom_call.1} parent=1 // pred_region
      %48 = vsyncadd [#allocation6], 0
      %s50 = sshll.u32 %s2, 4
      %s51 = int_to_ptr.hbm [resolvable:$true] %s50
      %s52 = sshll.u32 [#allocation7], 4
      %s53 = int_to_ptr.vmem [resolvable:$true] %s52
      %55 = dma.hbm_to_vmem [thread:$0]  %s51, 16, %s53, [#allocation6]
    $region13: #{tpu_custom_call.1} parent=1 // pred_fallthru
      _
    // Predicated region
    $region14: #{tpu_custom_call.1} parent=1 // pred_check
      _
    $region15: #{tpu_custom_call.1} parent=1 // pred_check_branch
      %57 = sbr.rel (0) target = $region17
    $region16: #{tpu_custom_call.1} parent=1 // pred_region
      %59 = vsyncadd [#allocation9], 0
      %s60 = sshll.u32 %s3, 4
      %s61 = int_to_ptr.hbm [resolvable:$true] %s60
      %s62 = sshll.u32 [#allocation8], 4
      %s63 = int_to_ptr.vmem [resolvable:$true] %s62
      %68 = dma.hbm_to_vmem [thread:$0]  %s61, 2048, %s63, [#allocation9], 128, 128, 8
    $region17: #{tpu_custom_call.1} parent=1 // pred_fallthru
      _
    // Predicated region
    $region18: #{tpu_custom_call.1} parent=1 // pred_check
      _
    $region19: #{tpu_custom_call.1} parent=1 // pred_check_branch
      %70 = sbr.rel (0) target = $region21
    $region20: #{tpu_custom_call.1} parent=1 // pred_region
      _
    $region21: #{tpu_custom_call.1} parent=1 // pred_fallthru
      _
    // Predicated region
    $region22: #{tpu_custom_call.1} parent=1 // pred_check
      _
    $region23: #{tpu_custom_call.1} parent=1 // pred_check_branch
      %72 = sbr.rel (0) target = $region25
    $region24: #{tpu_custom_call.1} parent=1 // pred_region
      %74 = vsyncadd [#allocation9], 0
      %s75 = sshll.u32 %s5, 4
      %s76 = int_to_ptr.hbm [resolvable:$true] %s75
      %s77 = sshll.u32 [#allocation10], 4
      %s78 = int_to_ptr.vmem [resolvable:$true] %s77
      %83 = dma.hbm_to_vmem [thread:$0]  %s76, 4096, %s78, [#allocation9], 128, 128, 8
    $region25: #{tpu_custom_call.1} parent=1 // pred_fallthru
      _
    // Predicated region
    $region26: #{tpu_custom_call.1} parent=1 // pred_check
      _
    $region27: #{tpu_custom_call.1} parent=1 // pred_check_branch
      %85 = sbr.rel (0) target = $region29
    $region28: #{tpu_custom_call.1} parent=1 // pred_region
      _
    $region29: #{tpu_custom_call.1} parent=1 // pred_fallthru
      _
    // Predicated region
    $region30: #{tpu_custom_call.1} parent=1 // pred_check
      _
    $region31: #{tpu_custom_call.1} parent=1 // pred_check_branch
      %87 = sbr.rel (0) target = $region33
    $region32: #{tpu_custom_call.1} parent=1 // pred_region
      %89 = vsyncadd [#allocation12], 0
      %s90 = sshll.u32 %s7, 4
      %s91 = int_to_ptr.hbm [resolvable:$true] %s90
      %s92 = sshll.u32 [#allocation11], 4
      %s93 = int_to_ptr.vmem [resolvable:$true] %s92
      %98 = dma.hbm_to_vmem [thread:$0]  %s91, 4096, %s93, [#allocation12], 128, 128, 8
    $region33: #{tpu_custom_call.1} parent=1 // pred_fallthru
      _
    // Predicated region
    $region34: #{tpu_custom_call.1} parent=1 // pred_check
      _
    $region35: #{tpu_custom_call.1} parent=1 // pred_check_branch
      %100 = sbr.rel (0) target = $region37
    $region36: #{tpu_custom_call.1} parent=1 // pred_region
      _
    $region37: #{tpu_custom_call.1} parent=1 // pred_fallthru
      _
    // Predicated region
    $region38: #{tpu_custom_call.1} parent=1 // pred_check
      _
    $region39: #{tpu_custom_call.1} parent=1 // pred_check_branch
      %102 = sbr.rel (0) target = $region41
    $region40: #{tpu_custom_call.1} parent=1 // pred_region
      %104 = vsyncadd [#allocation12], 0
      %s105 = sshll.u32 %s9, 4
      %s106 = int_to_ptr.hbm [resolvable:$true] %s105
      %s107 = sshll.u32 [#allocation13], 4
      %s108 = int_to_ptr.vmem [resolvable:$true] %s107
      %113 = dma.hbm_to_vmem [thread:$0]  %s106, 2048, %s108, [#allocation12], 64, 64, 4
    $region41: #{tpu_custom_call.1} parent=1 // pred_fallthru
      _
    // Predicated region
    $region42: #{tpu_custom_call.1} parent=1 // pred_check
      _
    $region43: #{tpu_custom_call.1} parent=1 // pred_check_branch
      %115 = sbr.rel (0) target = $region45
    $region44: #{tpu_custom_call.1} parent=1 // pred_region
      _
    $region45: #{tpu_custom_call.1} parent=1 // pred_fallthru
      _
    // Predicated region
    $region46: #{tpu_custom_call.1} parent=1 // pred_check
      _
    $region47: #{tpu_custom_call.1} parent=1 // pred_check_branch
      %117 = sbr.rel (0) target = $region49
    $region48: #{tpu_custom_call.1} parent=1 // pred_region
      %119 = dma.done [#allocation3], 128
    $region49: #{tpu_custom_call.1} parent=1 // pred_fallthru
      _
    // Predicated region
    $region50: #{tpu_custom_call.1} parent=1 // pred_check
      _
    $region51: #{tpu_custom_call.1} parent=1 // pred_check_branch
      %121 = sbr.rel (0) target = $region53
    $region52: #{tpu_custom_call.1} parent=1 // pred_region
      %123 = dma.done [#allocation6], 1024
    $region53: #{tpu_custom_call.1} parent=1 // pred_fallthru
      _
    // Predicated region
    $region54: #{tpu_custom_call.1} parent=1 // pred_check
      _
    $region55: #{tpu_custom_call.1} parent=1 // pred_check_branch
      %125 = sbr.rel (0) target = $region57
    $region56: #{tpu_custom_call.1} parent=1 // pred_region
      %127 = dma.done [#allocation6], 16
    $region57: #{tpu_custom_call.1} parent=1 // pred_fallthru
      _
    // Predicated region
    $region58: #{tpu_custom_call.1} parent=1 // pred_check
      _
    $region59: #{tpu_custom_call.1} parent=1 // pred_check_branch
      %129 = sbr.rel (0) target = $region61
    $region60: #{tpu_custom_call.1} parent=1 // pred_region
      %131 = dma.done [#allocation9], 2048
    $region61: #{tpu_custom_call.1} parent=1 // pred_fallthru
      _
    // Predicated region
    $region62: #{tpu_custom_call.1} parent=1 // pred_check
      _
    $region63: #{tpu_custom_call.1} parent=1 // pred_check_branch
      %133 = sbr.rel (0) target = $region65
    $region64: #{tpu_custom_call.1} parent=1 // pred_region
      %135 = dma.done [#allocation9], 4096
    $region65: #{tpu_custom_call.1} parent=1 // pred_fallthru
      _
    // Predicated region
    $region66: #{tpu_custom_call.1} parent=1 // pred_check
      _
    $region67: #{tpu_custom_call.1} parent=1 // pred_check_branch
      %137 = sbr.rel (0) target = $region69
    $region68: #{tpu_custom_call.1} parent=1 // pred_region
      %139 = dma.done [#allocation12], 4096
    $region69: #{tpu_custom_call.1} parent=1 // pred_fallthru
      _
    // Predicated region
    $region70: #{tpu_custom_call.1} parent=1 // pred_check
      _
    $region71: #{tpu_custom_call.1} parent=1 // pred_check_branch
      %141 = sbr.rel (0) target = $region73
    $region72: #{tpu_custom_call.1} parent=1 // pred_region
      %143 = dma.done [#allocation12], 2048
    $region73: #{tpu_custom_call.1} parent=1 // pred_fallthru
      _
    %v144 = vld [vmem:[#allocation2] sm:$0xff]
    %v145 = vpack.c.bf16 %v144, %v144
    %v146 = vld [vmem:[#allocation5] sm:$0xf]
    %v147 = vld [vmem:[#allocation5 + $0x4] sm:$0xf]
    %v148 = vld [vmem:[#allocation5 + $0x8] sm:$0xf]
    %v149 = vld [vmem:[#allocation5 + $0xc] sm:$0xf]
    %v150 = vld [vmem:[#allocation5 + $0x10] sm:$0xf]
    %v151 = vld [vmem:[#allocation5 + $0x14] sm:$0xf]
    %v152 = vld [vmem:[#allocation5 + $0x18] sm:$0xf]
    %v153 = vld [vmem:[#allocation5 + $0x1c] sm:$0xf]
    %v154 = vld [vmem:[#allocation5 + $0x20] sm:$0xf]
    %v155 = vld [vmem:[#allocation5 + $0x24] sm:$0xf]
    %v156 = vld [vmem:[#allocation5 + $0x28] sm:$0xf]
    %v157 = vld [vmem:[#allocation5 + $0x2c] sm:$0xf]
    %v158 = vld [vmem:[#allocation5 + $0x30] sm:$0xf]
    %v159 = vld [vmem:[#allocation5 + $0x34] sm:$0xf]
    %v160 = vld [vmem:[#allocation5 + $0x38] sm:$0xf]
    %v161 = vld [vmem:[#allocation5 + $0x3c] sm:$0xf]
    %v162 = vld [vmem:[#allocation7] sm:$0x1]
    %v164 = vperm.slane %v162, 0
    %v182 = vunpack.c.l.b16 %v146
    %v183 = vunpack.c.l.b16 %v147
    %v184 = vunpack.c.l.b16 %v148
    %v185 = vunpack.c.l.b16 %v149
    %v186 = vunpack.c.l.b16 %v150
    %v187 = vunpack.c.l.b16 %v151
    %v188 = vunpack.c.l.b16 %v152
    %v189 = vunpack.c.l.b16 %v153
    %v190 = vunpack.c.l.b16 %v154
    %v191 = vunpack.c.l.b16 %v155
    %v192 = vunpack.c.l.b16 %v156
    %v193 = vunpack.c.l.b16 %v157
    %v194 = vunpack.c.l.b16 %v158
    %v195 = vunpack.c.l.b16 %v159
    %v196 = vunpack.c.l.b16 %v160
    %v197 = vunpack.c.l.b16 %v161
    %v198 = vpack.c.b16 %v183, %v182
    %v199 = vpack.c.b16 %v185, %v184
    %v200 = vpack.c.b16 %v187, %v186
    %v201 = vpack.c.b16 %v189, %v188
    %v202 = vpack.c.b16 %v191, %v190
    %v203 = vpack.c.b16 %v193, %v192
    %v204 = vpack.c.b16 %v195, %v194
    %v205 = vpack.c.b16 %v197, %v196
    %214 = vmatpush.bf16.msra.mxu0 %v205
    %215 = vmatpush.bf16.msra.mxu0 %v204
    %216 = vmatpush.bf16.msra.mxu0 %v203
    %217 = vmatpush.bf16.msra.mxu0 %v202
    %218 = vmatpush.bf16.msra.mxu0 %v201
    %219 = vmatpush.bf16.msra.mxu0 %v200
    %220 = vmatpush.bf16.msra.mxu0 %v199
    %221 = vmatpush.bf16.msra.mxu0 %v198
    %222 = vmatmul.bf16.gmra.mxu0 %v145
    %v223 = vpop.f32.mrf.mxu0
    %v224 = vadd.f32 %v164, %v223
    %v225 = vpop.f32.mrf.mxu0
    %226 = vdwg.mxu0
    %v227 = vmax.f32 %v224, 0.0
    %v228 = vpack.c.bf16 %v227, %v227
    %v229 = vld [vmem:[#allocation8] sm:$0xff]
    %v230 = vld [vmem:[#allocation8 + $0x8] sm:$0xff]
    %v231 = vld [vmem:[#allocation8 + $0x10] sm:$0xff]
    %v232 = vld [vmem:[#allocation8 + $0x18] sm:$0xff]
    %v233 = vld [vmem:[#allocation8 + $0x20] sm:$0xff]
    %v234 = vld [vmem:[#allocation8 + $0x28] sm:$0xff]
    %v235 = vld [vmem:[#allocation8 + $0x30] sm:$0xff]
    %v236 = vld [vmem:[#allocation8 + $0x38] sm:$0xff]
    %v237 = vld [vmem:[#allocation8 + $0x40] sm:$0xff]
    %v238 = vld [vmem:[#allocation8 + $0x48] sm:$0xff]
    %v239 = vld [vmem:[#allocation8 + $0x50] sm:$0xff]
    %v240 = vld [vmem:[#allocation8 + $0x58] sm:$0xff]
    %v241 = vld [vmem:[#allocation8 + $0x60] sm:$0xff]
    %v242 = vld [vmem:[#allocation8 + $0x68] sm:$0xff]
    %v243 = vld [vmem:[#allocation8 + $0x70] sm:$0xff]
    %v244 = vld [vmem:[#allocation8 + $0x78] sm:$0xff]
    %v245 = vld [vmem:[%s4] sm:$0x3]
    %v247 = vperm.slane %v245, 0
    %v248 = vperm.slane %v245, 1
    %v267 = vunpack.c.l.b16 %v229
    %v268 = vunpack.c.h.b16 %v229
    %v269 = vunpack.c.l.b16 %v230
    %v270 = vunpack.c.h.b16 %v230
    %v271 = vunpack.c.l.b16 %v231
    %v272 = vunpack.c.h.b16 %v231
    %v273 = vunpack.c.l.b16 %v232
    %v274 = vunpack.c.h.b16 %v232
    %v275 = vunpack.c.l.b16 %v233
    %v276 = vunpack.c.h.b16 %v233
    %v277 = vunpack.c.l.b16 %v234
    %v278 = vunpack.c.h.b16 %v234
    %v279 = vunpack.c.l.b16 %v235
    %v280 = vunpack.c.h.b16 %v235
    %v281 = vunpack.c.l.b16 %v236
    %v282 = vunpack.c.h.b16 %v236
    %v283 = vunpack.c.l.b16 %v237
    %v284 = vunpack.c.h.b16 %v237
    %v285 = vunpack.c.l.b16 %v238
    %v286 = vunpack.c.h.b16 %v238
    %v287 = vunpack.c.l.b16 %v239
    %v288 = vunpack.c.h.b16 %v239
    %v289 = vunpack.c.l.b16 %v240
    %v290 = vunpack.c.h.b16 %v240
    %v291 = vunpack.c.l.b16 %v241
    %v292 = vunpack.c.h.b16 %v241
    %v293 = vunpack.c.l.b16 %v242
    %v294 = vunpack.c.h.b16 %v242
    %v295 = vunpack.c.l.b16 %v243
    %v296 = vunpack.c.h.b16 %v243
    %v297 = vunpack.c.l.b16 %v244
    %v298 = vunpack.c.h.b16 %v244
    %v299 = vpack.c.b16 %v269, %v267
    %v300 = vpack.c.b16 %v270, %v268
    %v301 = vpack.c.b16 %v273, %v271
    %v302 = vpack.c.b16 %v274, %v272
    %v303 = vpack.c.b16 %v277, %v275
    %v304 = vpack.c.b16 %v278, %v276
    %v305 = vpack.c.b16 %v281, %v279
    %v306 = vpack.c.b16 %v282, %v280
    %v307 = vpack.c.b16 %v285, %v283
    %v308 = vpack.c.b16 %v286, %v284
    %v309 = vpack.c.b16 %v289, %v287
    %v310 = vpack.c.b16 %v290, %v288
    %v311 = vpack.c.b16 %v293, %v291
    %v312 = vpack.c.b16 %v294, %v292
    %v313 = vpack.c.b16 %v297, %v295
    %v314 = vpack.c.b16 %v298, %v296
    %331 = vmatpush.bf16.msra.mxu0 %v313
    %332 = vmatpush.bf16.msra.mxu0 %v311
    %333 = vmatpush.bf16.msra.mxu0 %v309
    %334 = vmatpush.bf16.msra.mxu0 %v307
    %335 = vmatpush.bf16.msra.mxu0 %v305
    %336 = vmatpush.bf16.msra.mxu0 %v303
    %337 = vmatpush.bf16.msra.mxu0 %v301
    %338 = vmatpush.bf16.msra.mxu0 %v299
    %339 = vmatmul.bf16.gmra.mxu0 %v228
    %v340 = vpop.f32.mrf.mxu0
    %v341 = vadd.f32 %v247, %v340
    %v342 = vpop.f32.mrf.mxu0
    %343 = vdwg.mxu0
    %344 = vmatpush.bf16.msra.mxu0 %v314
    %345 = vmatpush.bf16.msra.mxu0 %v312
    %346 = vmatpush.bf16.msra.mxu0 %v310
    %347 = vmatpush.bf16.msra.mxu0 %v308
    %348 = vmatpush.bf16.msra.mxu0 %v306
    %349 = vmatpush.bf16.msra.mxu0 %v304
    %350 = vmatpush.bf16.msra.mxu0 %v302
    %351 = vmatpush.bf16.msra.mxu0 %v300
    %352 = vmatmul.bf16.gmra.mxu0 %v228
    %v353 = vpop.f32.mrf.mxu0
    %v354 = vadd.f32 %v248, %v353
    %v355 = vpop.f32.mrf.mxu0
    %356 = vdwg.mxu0
    %v357 = vmax.f32 %v341, 0.0
    %v358 = vmax.f32 %v354, 0.0
    %v359 = vpack.c.bf16 %v357, %v357
    %v360 = vpack.c.bf16 %v358, %v358
    %v361 = vld [vmem:[#allocation10] sm:$0xff]
    %v362 = vld [vmem:[#allocation10 + $0x8] sm:$0xff]
    %v363 = vld [vmem:[#allocation10 + $0x10] sm:$0xff]
    %v364 = vld [vmem:[#allocation10 + $0x18] sm:$0xff]
    %v365 = vld [vmem:[#allocation10 + $0x20] sm:$0xff]
    %v366 = vld [vmem:[#allocation10 + $0x28] sm:$0xff]
    %v367 = vld [vmem:[#allocation10 + $0x30] sm:$0xff]
    %v368 = vld [vmem:[#allocation10 + $0x38] sm:$0xff]
    %v369 = vld [vmem:[#allocation10 + $0x40] sm:$0xff]
    %v370 = vld [vmem:[#allocation10 + $0x48] sm:$0xff]
    %v371 = vld [vmem:[#allocation10 + $0x50] sm:$0xff]
    %v372 = vld [vmem:[#allocation10 + $0x58] sm:$0xff]
    %v373 = vld [vmem:[#allocation10 + $0x60] sm:$0xff]
    %v374 = vld [vmem:[#allocation10 + $0x68] sm:$0xff]
    %v375 = vld [vmem:[#allocation10 + $0x70] sm:$0xff]
    %v376 = vld [vmem:[#allocation10 + $0x78] sm:$0xff]
    %v377 = vld [vmem:[#allocation10 + $0x80] sm:$0xff]
    %v378 = vld [vmem:[#allocation10 + $0x88] sm:$0xff]
    %v379 = vld [vmem:[#allocation10 + $0x90] sm:$0xff]
    %v380 = vld [vmem:[#allocation10 + $0x98] sm:$0xff]
    %v381 = vld [vmem:[#allocation10 + $0xa0] sm:$0xff]
    %v382 = vld [vmem:[#allocation10 + $0xa8] sm:$0xff]
    %v383 = vld [vmem:[#allocation10 + $0xb0] sm:$0xff]
    %v384 = vld [vmem:[#allocation10 + $0xb8] sm:$0xff]
    %v385 = vld [vmem:[#allocation10 + $0xc0] sm:$0xff]
    %v386 = vld [vmem:[#allocation10 + $0xc8] sm:$0xff]
    %v387 = vld [vmem:[#allocation10 + $0xd0] sm:$0xff]
    %v388 = vld [vmem:[#allocation10 + $0xd8] sm:$0xff]
    %v389 = vld [vmem:[#allocation10 + $0xe0] sm:$0xff]
    %v390 = vld [vmem:[#allocation10 + $0xe8] sm:$0xff]
    %v391 = vld [vmem:[#allocation10 + $0xf0] sm:$0xff]
    %v392 = vld [vmem:[#allocation10 + $0xf8] sm:$0xff]
    %v393 = vld [vmem:[%s6] sm:$0x3]
    %v395 = vperm.slane %v393, 0
    %v396 = vperm.slane %v393, 1
    %v431 = vunpack.c.l.b16 %v361
    %v432 = vunpack.c.h.b16 %v361
    %v433 = vunpack.c.l.b16 %v362
    %v434 = vunpack.c.h.b16 %v362
    %v435 = vunpack.c.l.b16 %v363
    %v436 = vunpack.c.h.b16 %v363
    %v437 = vunpack.c.l.b16 %v364
    %v438 = vunpack.c.h.b16 %v364
    %v439 = vunpack.c.l.b16 %v365
    %v440 = vunpack.c.h.b16 %v365
    %v441 = vunpack.c.l.b16 %v366
    %v442 = vunpack.c.h.b16 %v366
    %v443 = vunpack.c.l.b16 %v367
    %v444 = vunpack.c.h.b16 %v367
    %v445 = vunpack.c.l.b16 %v368
    %v446 = vunpack.c.h.b16 %v368
    %v447 = vunpack.c.l.b16 %v369
    %v448 = vunpack.c.h.b16 %v369
    %v449 = vunpack.c.l.b16 %v370
    %v450 = vunpack.c.h.b16 %v370
    %v451 = vunpack.c.l.b16 %v371
    %v452 = vunpack.c.h.b16 %v371
    %v453 = vunpack.c.l.b16 %v372
    %v454 = vunpack.c.h.b16 %v372
    %v455 = vunpack.c.l.b16 %v373
    %v456 = vunpack.c.h.b16 %v373
    %v457 = vunpack.c.l.b16 %v374
    %v458 = vunpack.c.h.b16 %v374
    %v459 = vunpack.c.l.b16 %v375
    %v460 = vunpack.c.h.b16 %v375
    %v461 = vunpack.c.l.b16 %v376
    %v462 = vunpack.c.h.b16 %v376
    %v463 = vunpack.c.l.b16 %v377
    %v464 = vunpack.c.h.b16 %v377
    %v465 = vunpack.c.l.b16 %v378
    %v466 = vunpack.c.h.b16 %v378
    %v467 = vunpack.c.l.b16 %v379
    %v468 = vunpack.c.h.b16 %v379
    %v469 = vunpack.c.l.b16 %v380
    %v470 = vunpack.c.h.b16 %v380
    %v471 = vunpack.c.l.b16 %v381
    %v472 = vunpack.c.h.b16 %v381
    %v473 = vunpack.c.l.b16 %v382
    %v474 = vunpack.c.h.b16 %v382
    %v475 = vunpack.c.l.b16 %v383
    %v476 = vunpack.c.h.b16 %v383
    %v477 = vunpack.c.l.b16 %v384
    %v478 = vunpack.c.h.b16 %v384
    %v479 = vunpack.c.l.b16 %v385
    %v480 = vunpack.c.h.b16 %v385
    %v481 = vunpack.c.l.b16 %v386
    %v482 = vunpack.c.h.b16 %v386
    %v483 = vunpack.c.l.b16 %v387
    %v484 = vunpack.c.h.b16 %v387
    %v485 = vunpack.c.l.b16 %v388
    %v486 = vunpack.c.h.b16 %v388
    %v487 = vunpack.c.l.b16 %v389
    %v488 = vunpack.c.h.b16 %v389
    %v489 = vunpack.c.l.b16 %v390
    %v490 = vunpack.c.h.b16 %v390
    %v491 = vunpack.c.l.b16 %v391
    %v492 = vunpack.c.h.b16 %v391
    %v493 = vunpack.c.l.b16 %v392
    %v494 = vunpack.c.h.b16 %v392
    %v495 = vpack.c.b16 %v433, %v431
    %v496 = vpack.c.b16 %v434, %v432
    %v497 = vpack.c.b16 %v437, %v435
    %v498 = vpack.c.b16 %v438, %v436
    %v499 = vpack.c.b16 %v441, %v439
    %v500 = vpack.c.b16 %v442, %v440
    %v501 = vpack.c.b16 %v445, %v443
    %v502 = vpack.c.b16 %v446, %v444
    %v503 = vpack.c.b16 %v449, %v447
    %v504 = vpack.c.b16 %v450, %v448
    %v505 = vpack.c.b16 %v453, %v451
    %v506 = vpack.c.b16 %v454, %v452
    %v507 = vpack.c.b16 %v457, %v455
    %v508 = vpack.c.b16 %v458, %v456
    %v509 = vpack.c.b16 %v461, %v459
    %v510 = vpack.c.b16 %v462, %v460
    %v511 = vpack.c.b16 %v465, %v463
    %v512 = vpack.c.b16 %v466, %v464
    %v513 = vpack.c.b16 %v469, %v467
    %v514 = vpack.c.b16 %v470, %v468
    %v515 = vpack.c.b16 %v473, %v471
    %v516 = vpack.c.b16 %v474, %v472
    %v517 = vpack.c.b16 %v477, %v475
    %v518 = vpack.c.b16 %v478, %v476
    %v519 = vpack.c.b16 %v481, %v479
    %v520 = vpack.c.b16 %v482, %v480
    %v521 = vpack.c.b16 %v485, %v483
    %v522 = vpack.c.b16 %v486, %v484
    %v523 = vpack.c.b16 %v489, %v487
    %v524 = vpack.c.b16 %v490, %v488
    %v525 = vpack.c.b16 %v493, %v491
    %v526 = vpack.c.b16 %v494, %v492
    %559 = vmatpush.bf16.msra.mxu0 %v509
    %560 = vmatpush.bf16.msra.mxu0 %v507
    %561 = vmatpush.bf16.msra.mxu0 %v505
    %562 = vmatpush.bf16.msra.mxu0 %v503
    %563 = vmatpush.bf16.msra.mxu0 %v501
    %564 = vmatpush.bf16.msra.mxu0 %v499
    %565 = vmatpush.bf16.msra.mxu0 %v497
    %566 = vmatpush.bf16.msra.mxu0 %v495
    %567 = vmatmul.bf16.gmra.mxu0 %v359
    %v568 = vpop.f32.mrf.mxu0
    %v569 = vadd.f32 %v395, %v568
    %v570 = vpop.f32.mrf.mxu0
    %571 = vdwg.mxu0
    %572 = vmatpush.bf16.msra.mxu0 %v525
    %573 = vmatpush.bf16.msra.mxu0 %v523
    %574 = vmatpush.bf16.msra.mxu0 %v521
    %575 = vmatpush.bf16.msra.mxu0 %v519
    %576 = vmatpush.bf16.msra.mxu0 %v517
    %577 = vmatpush.bf16.msra.mxu0 %v515
    %578 = vmatpush.bf16.msra.mxu0 %v513
    %579 = vmatpush.bf16.msra.mxu0 %v511
    %580 = vmatmul.bf16.gmra.mxu0 %v360
    %v581 = vpop.f32.mrf.mxu0
    %v582 = vadd.f32 %v569, %v581
    %v583 = vpop.f32.mrf.mxu0
    %584 = vdwg.mxu0
    %585 = vmatpush.bf16.msra.mxu0 %v510
    %586 = vmatpush.bf16.msra.mxu0 %v508
    %587 = vmatpush.bf16.msra.mxu0 %v506
    %588 = vmatpush.bf16.msra.mxu0 %v504
    %589 = vmatpush.bf16.msra.mxu0 %v502
    %590 = vmatpush.bf16.msra.mxu0 %v500
    %591 = vmatpush.bf16.msra.mxu0 %v498
    %592 = vmatpush.bf16.msra.mxu0 %v496
    %593 = vmatmul.bf16.gmra.mxu0 %v359
    %v594 = vpop.f32.mrf.mxu0
    %v595 = vadd.f32 %v396, %v594
    %v596 = vpop.f32.mrf.mxu0
    %597 = vdwg.mxu0
    %598 = vmatpush.bf16.msra.mxu0 %v526
    %599 = vmatpush.bf16.msra.mxu0 %v524
    %600 = vmatpush.bf16.msra.mxu0 %v522
    %601 = vmatpush.bf16.msra.mxu0 %v520
    %602 = vmatpush.bf16.msra.mxu0 %v518
    %603 = vmatpush.bf16.msra.mxu0 %v516
    %604 = vmatpush.bf16.msra.mxu0 %v514
    %605 = vmatpush.bf16.msra.mxu0 %v512
    %606 = vmatmul.bf16.gmra.mxu0 %v360
    %v607 = vpop.f32.mrf.mxu0
    %v608 = vadd.f32 %v595, %v607
    %v609 = vpop.f32.mrf.mxu0
    %610 = vdwg.mxu0
    %v611 = vmax.f32 %v582, 0.0
    %v612 = vmax.f32 %v608, 0.0
    %v613 = vpack.c.bf16 %v611, %v611
    %v614 = vpack.c.bf16 %v612, %v612
    %v615 = vld [vmem:[#allocation11] sm:$0xff]
    %v616 = vld [vmem:[#allocation11 + $0x8] sm:$0xff]
    %v617 = vld [vmem:[#allocation11 + $0x10] sm:$0xff]
    %v618 = vld [vmem:[#allocation11 + $0x18] sm:$0xff]
    %v619 = vld [vmem:[#allocation11 + $0x20] sm:$0xff]
    %v620 = vld [vmem:[#allocation11 + $0x28] sm:$0xff]
    %v621 = vld [vmem:[#allocation11 + $0x30] sm:$0xff]
    %v622 = vld [vmem:[#allocation11 + $0x38] sm:$0xff]
    %v623 = vld [vmem:[#allocation11 + $0x40] sm:$0xff]
    %v624 = vld [vmem:[#allocation11 + $0x48] sm:$0xff]
    %v625 = vld [vmem:[#allocation11 + $0x50] sm:$0xff]
    %v626 = vld [vmem:[#allocation11 + $0x58] sm:$0xff]
    %v627 = vld [vmem:[#allocation11 + $0x60] sm:$0xff]
    %v628 = vld [vmem:[#allocation11 + $0x68] sm:$0xff]
    %v629 = vld [vmem:[#allocation11 + $0x70] sm:$0xff]
    %v630 = vld [vmem:[#allocation11 + $0x78] sm:$0xff]
    %v631 = vld [vmem:[#allocation11 + $0x80] sm:$0xff]
    %v632 = vld [vmem:[#allocation11 + $0x88] sm:$0xff]
    %v633 = vld [vmem:[#allocation11 + $0x90] sm:$0xff]
    %v634 = vld [vmem:[#allocation11 + $0x98] sm:$0xff]
    %v635 = vld [vmem:[#allocation11 + $0xa0] sm:$0xff]
    %v636 = vld [vmem:[#allocation11 + $0xa8] sm:$0xff]
    %v637 = vld [vmem:[#allocation11 + $0xb0] sm:$0xff]
    %v638 = vld [vmem:[#allocation11 + $0xb8] sm:$0xff]
    %v639 = vld [vmem:[#allocation11 + $0xc0] sm:$0xff]
    %v640 = vld [vmem:[#allocation11 + $0xc8] sm:$0xff]
    %v641 = vld [vmem:[#allocation11 + $0xd0] sm:$0xff]
    %v642 = vld [vmem:[#allocation11 + $0xd8] sm:$0xff]
    %v643 = vld [vmem:[#allocation11 + $0xe0] sm:$0xff]
    %v644 = vld [vmem:[#allocation11 + $0xe8] sm:$0xff]
    %v645 = vld [vmem:[#allocation11 + $0xf0] sm:$0xff]
    %v646 = vld [vmem:[#allocation11 + $0xf8] sm:$0xff]
    %v647 = vld [vmem:[%s8] sm:$0x3]
    %v649 = vperm.slane %v647, 0
    %v650 = vperm.slane %v647, 1
    %v685 = vunpack.c.l.b16 %v615
    %v686 = vunpack.c.h.b16 %v615
    %v687 = vunpack.c.l.b16 %v616
    %v688 = vunpack.c.h.b16 %v616
    %v689 = vunpack.c.l.b16 %v617
    %v690 = vunpack.c.h.b16 %v617
    %v691 = vunpack.c.l.b16 %v618
    %v692 = vunpack.c.h.b16 %v618
    %v693 = vunpack.c.l.b16 %v619
    %v694 = vunpack.c.h.b16 %v619
    %v695 = vunpack.c.l.b16 %v620
    %v696 = vunpack.c.h.b16 %v620
    %v697 = vunpack.c.l.b16 %v621
    %v698 = vunpack.c.h.b16 %v621
    %v699 = vunpack.c.l.b16 %v622
    %v700 = vunpack.c.h.b16 %v622
    %v701 = vunpack.c.l.b16 %v623
    %v702 = vunpack.c.h.b16 %v623
    %v703 = vunpack.c.l.b16 %v624
    %v704 = vunpack.c.h.b16 %v624
    %v705 = vunpack.c.l.b16 %v625
    %v706 = vunpack.c.h.b16 %v625
    %v707 = vunpack.c.l.b16 %v626
    %v708 = vunpack.c.h.b16 %v626
    %v709 = vunpack.c.l.b16 %v627
    %v710 = vunpack.c.h.b16 %v627
    %v711 = vunpack.c.l.b16 %v628
    %v712 = vunpack.c.h.b16 %v628
    %v713 = vunpack.c.l.b16 %v629
    %v714 = vunpack.c.h.b16 %v629
    %v715 = vunpack.c.l.b16 %v630
    %v716 = vunpack.c.h.b16 %v630
    %v717 = vunpack.c.l.b16 %v631
    %v718 = vunpack.c.h.b16 %v631
    %v719 = vunpack.c.l.b16 %v632
    %v720 = vunpack.c.h.b16 %v632
    %v721 = vunpack.c.l.b16 %v633
    %v722 = vunpack.c.h.b16 %v633
    %v723 = vunpack.c.l.b16 %v634
    %v724 = vunpack.c.h.b16 %v634
    %v725 = vunpack.c.l.b16 %v635
    %v726 = vunpack.c.h.b16 %v635
    %v727 = vunpack.c.l.b16 %v636
    %v728 = vunpack.c.h.b16 %v636
    %v729 = vunpack.c.l.b16 %v637
    %v730 = vunpack.c.h.b16 %v637
    %v731 = vunpack.c.l.b16 %v638
    %v732 = vunpack.c.h.b16 %v638
    %v733 = vunpack.c.l.b16 %v639
    %v734 = vunpack.c.h.b16 %v639
    %v735 = vunpack.c.l.b16 %v640
    %v736 = vunpack.c.h.b16 %v640
    %v737 = vunpack.c.l.b16 %v641
    %v738 = vunpack.c.h.b16 %v641
    %v739 = vunpack.c.l.b16 %v642
    %v740 = vunpack.c.h.b16 %v642
    %v741 = vunpack.c.l.b16 %v643
    %v742 = vunpack.c.h.b16 %v643
    %v743 = vunpack.c.l.b16 %v644
    %v744 = vunpack.c.h.b16 %v644
    %v745 = vunpack.c.l.b16 %v645
    %v746 = vunpack.c.h.b16 %v645
    %v747 = vunpack.c.l.b16 %v646
    %v748 = vunpack.c.h.b16 %v646
    %v749 = vpack.c.b16 %v687, %v685
    %v750 = vpack.c.b16 %v688, %v686
    %v751 = vpack.c.b16 %v691, %v689
    %v752 = vpack.c.b16 %v692, %v690
    %v753 = vpack.c.b16 %v695, %v693
    %v754 = vpack.c.b16 %v696, %v694
    %v755 = vpack.c.b16 %v699, %v697
    %v756 = vpack.c.b16 %v700, %v698
    %v757 = vpack.c.b16 %v703, %v701
    %v758 = vpack.c.b16 %v704, %v702
    %v759 = vpack.c.b16 %v707, %v705
    %v760 = vpack.c.b16 %v708, %v706
    %v761 = vpack.c.b16 %v711, %v709
    %v762 = vpack.c.b16 %v712, %v710
    %v763 = vpack.c.b16 %v715, %v713
    %v764 = vpack.c.b16 %v716, %v714
    %v765 = vpack.c.b16 %v719, %v717
    %v766 = vpack.c.b16 %v720, %v718
    %v767 = vpack.c.b16 %v723, %v721
    %v768 = vpack.c.b16 %v724, %v722
    %v769 = vpack.c.b16 %v727, %v725
    %v770 = vpack.c.b16 %v728, %v726
    %v771 = vpack.c.b16 %v731, %v729
    %v772 = vpack.c.b16 %v732, %v730
    %v773 = vpack.c.b16 %v735, %v733
    %v774 = vpack.c.b16 %v736, %v734
    %v775 = vpack.c.b16 %v739, %v737
    %v776 = vpack.c.b16 %v740, %v738
    %v777 = vpack.c.b16 %v743, %v741
    %v778 = vpack.c.b16 %v744, %v742
    %v779 = vpack.c.b16 %v747, %v745
    %v780 = vpack.c.b16 %v748, %v746
    %813 = vmatpush.bf16.msra.mxu0 %v763
    %814 = vmatpush.bf16.msra.mxu0 %v761
    %815 = vmatpush.bf16.msra.mxu0 %v759
    %816 = vmatpush.bf16.msra.mxu0 %v757
    %817 = vmatpush.bf16.msra.mxu0 %v755
    %818 = vmatpush.bf16.msra.mxu0 %v753
    %819 = vmatpush.bf16.msra.mxu0 %v751
    %820 = vmatpush.bf16.msra.mxu0 %v749
    %821 = vmatmul.bf16.gmra.mxu0 %v613
    %v822 = vpop.f32.mrf.mxu0
    %v823 = vadd.f32 %v649, %v822
    %v824 = vpop.f32.mrf.mxu0
    %825 = vdwg.mxu0
    %826 = vmatpush.bf16.msra.mxu0 %v779
    %827 = vmatpush.bf16.msra.mxu0 %v777
    %828 = vmatpush.bf16.msra.mxu0 %v775
    %829 = vmatpush.bf16.msra.mxu0 %v773
    %830 = vmatpush.bf16.msra.mxu0 %v771
    %831 = vmatpush.bf16.msra.mxu0 %v769
    %832 = vmatpush.bf16.msra.mxu0 %v767
    %833 = vmatpush.bf16.msra.mxu0 %v765
    %834 = vmatmul.bf16.gmra.mxu0 %v614
    %v835 = vpop.f32.mrf.mxu0
    %v836 = vadd.f32 %v823, %v835
    %v837 = vpop.f32.mrf.mxu0
    %838 = vdwg.mxu0
    %839 = vmatpush.bf16.msra.mxu0 %v764
    %840 = vmatpush.bf16.msra.mxu0 %v762
    %841 = vmatpush.bf16.msra.mxu0 %v760
    %842 = vmatpush.bf16.msra.mxu0 %v758
    %843 = vmatpush.bf16.msra.mxu0 %v756
    %844 = vmatpush.bf16.msra.mxu0 %v754
    %845 = vmatpush.bf16.msra.mxu0 %v752
    %846 = vmatpush.bf16.msra.mxu0 %v750
    %847 = vmatmul.bf16.gmra.mxu0 %v613
    %v848 = vpop.f32.mrf.mxu0
    %v849 = vadd.f32 %v650, %v848
    %v850 = vpop.f32.mrf.mxu0
    %851 = vdwg.mxu0
    %852 = vmatpush.bf16.msra.mxu0 %v780
    %853 = vmatpush.bf16.msra.mxu0 %v778
    %854 = vmatpush.bf16.msra.mxu0 %v776
    %855 = vmatpush.bf16.msra.mxu0 %v774
    %856 = vmatpush.bf16.msra.mxu0 %v772
    %857 = vmatpush.bf16.msra.mxu0 %v770
    %858 = vmatpush.bf16.msra.mxu0 %v768
    %859 = vmatpush.bf16.msra.mxu0 %v766
    %860 = vmatmul.bf16.gmra.mxu0 %v614
    %v861 = vpop.f32.mrf.mxu0
    %v862 = vadd.f32 %v849, %v861
    %v863 = vpop.f32.mrf.mxu0
    %864 = vdwg.mxu0
    %v865 = vmax.f32 %v836, 0.0
    %v866 = vmax.f32 %v862, 0.0
    %v867 = vpack.c.bf16 %v865, %v865
    %v868 = vpack.c.bf16 %v866, %v866
    %v869 = vld [vmem:[#allocation13] sm:$0xf]
    %v870 = vld [vmem:[#allocation13 + $0x4] sm:$0xf]
    %v871 = vld [vmem:[#allocation13 + $0x8] sm:$0xf]
    %v872 = vld [vmem:[#allocation13 + $0xc] sm:$0xf]
    %v873 = vld [vmem:[#allocation13 + $0x10] sm:$0xf]
    %v874 = vld [vmem:[#allocation13 + $0x14] sm:$0xf]
    %v875 = vld [vmem:[#allocation13 + $0x18] sm:$0xf]
    %v876 = vld [vmem:[#allocation13 + $0x1c] sm:$0xf]
    %v877 = vld [vmem:[#allocation13 + $0x20] sm:$0xf]
    %v878 = vld [vmem:[#allocation13 + $0x24] sm:$0xf]
    %v879 = vld [vmem:[#allocation13 + $0x28] sm:$0xf]
    %v880 = vld [vmem:[#allocation13 + $0x2c] sm:$0xf]
    %v881 = vld [vmem:[#allocation13 + $0x30] sm:$0xf]
    %v882 = vld [vmem:[#allocation13 + $0x34] sm:$0xf]
    %v883 = vld [vmem:[#allocation13 + $0x38] sm:$0xf]
    %v884 = vld [vmem:[#allocation13 + $0x3c] sm:$0xf]
    %v885 = vld [vmem:[#allocation13 + $0x40] sm:$0xf]
    %v886 = vld [vmem:[#allocation13 + $0x44] sm:$0xf]
    %v887 = vld [vmem:[#allocation13 + $0x48] sm:$0xf]
    %v888 = vld [vmem:[#allocation13 + $0x4c] sm:$0xf]
    %v889 = vld [vmem:[#allocation13 + $0x50] sm:$0xf]
    %v890 = vld [vmem:[#allocation13 + $0x54] sm:$0xf]
    %v891 = vld [vmem:[#allocation13 + $0x58] sm:$0xf]
    %v892 = vld [vmem:[#allocation13 + $0x5c] sm:$0xf]
    %v893 = vld [vmem:[#allocation13 + $0x60] sm:$0xf]
    %v894 = vld [vmem:[#allocation13 + $0x64] sm:$0xf]
    %v895 = vld [vmem:[#allocation13 + $0x68] sm:$0xf]
    %v896 = vld [vmem:[#allocation13 + $0x6c] sm:$0xf]
    %v897 = vld [vmem:[#allocation13 + $0x70] sm:$0xf]
    %v898 = vld [vmem:[#allocation13 + $0x74] sm:$0xf]
    %v899 = vld [vmem:[#allocation13 + $0x78] sm:$0xf]
    %v900 = vld [vmem:[#allocation13 + $0x7c] sm:$0xf]
    %v901 = vld [vmem:[%s10] sm:$0x1]
    %v903 = vperm.slane %v901, 0
    %v937 = vunpack.c.l.b16 %v869
    %v938 = vunpack.c.l.b16 %v870
    %v939 = vunpack.c.l.b16 %v871
    %v940 = vunpack.c.l.b16 %v872
    %v941 = vunpack.c.l.b16 %v873
    %v942 = vunpack.c.l.b16 %v874
    %v943 = vunpack.c.l.b16 %v875
    %v944 = vunpack.c.l.b16 %v876
    %v945 = vunpack.c.l.b16 %v877
    %v946 = vunpack.c.l.b16 %v878
    %v947 = vunpack.c.l.b16 %v879
    %v948 = vunpack.c.l.b16 %v880
    %v949 = vunpack.c.l.b16 %v881
    %v950 = vunpack.c.l.b16 %v882
    %v951 = vunpack.c.l.b16 %v883
    %v952 = vunpack.c.l.b16 %v884
    %v953 = vunpack.c.l.b16 %v885
    %v954 = vunpack.c.l.b16 %v886
    %v955 = vunpack.c.l.b16 %v887
    %v956 = vunpack.c.l.b16 %v888
    %v957 = vunpack.c.l.b16 %v889
    %v958 = vunpack.c.l.b16 %v890
    %v959 = vunpack.c.l.b16 %v891
    %v960 = vunpack.c.l.b16 %v892
    %v961 = vunpack.c.l.b16 %v893
    %v962 = vunpack.c.l.b16 %v894
    %v963 = vunpack.c.l.b16 %v895
    %v964 = vunpack.c.l.b16 %v896
    %v965 = vunpack.c.l.b16 %v897
    %v966 = vunpack.c.l.b16 %v898
    %v967 = vunpack.c.l.b16 %v899
    %v968 = vunpack.c.l.b16 %v900
    %v969 = vpack.c.b16 %v938, %v937
    %v970 = vpack.c.b16 %v940, %v939
    %v971 = vpack.c.b16 %v942, %v941
    %v972 = vpack.c.b16 %v944, %v943
    %v973 = vpack.c.b16 %v946, %v945
    %v974 = vpack.c.b16 %v948, %v947
    %v975 = vpack.c.b16 %v950, %v949
    %v976 = vpack.c.b16 %v952, %v951
    %v977 = vpack.c.b16 %v954, %v953
    %v978 = vpack.c.b16 %v956, %v955
    %v979 = vpack.c.b16 %v958, %v957
    %v980 = vpack.c.b16 %v960, %v959
    %v981 = vpack.c.b16 %v962, %v961
    %v982 = vpack.c.b16 %v964, %v963
    %v983 = vpack.c.b16 %v966, %v965
    %v984 = vpack.c.b16 %v968, %v967
    %1001 = vmatpush.bf16.msra.mxu0 %v976
    %1002 = vmatpush.bf16.msra.mxu0 %v975
    %1003 = vmatpush.bf16.msra.mxu0 %v974
    %1004 = vmatpush.bf16.msra.mxu0 %v973
    %1005 = vmatpush.bf16.msra.mxu0 %v972
    %1006 = vmatpush.bf16.msra.mxu0 %v971
    %1007 = vmatpush.bf16.msra.mxu0 %v970
    %1008 = vmatpush.bf16.msra.mxu0 %v969
    %1009 = vmatmul.bf16.gmra.mxu0 %v867
    %v1010 = vpop.f32.mrf.mxu0
    %v1011 = vadd.f32 %v903, %v1010
    %v1012 = vpop.f32.mrf.mxu0
    %1013 = vdwg.mxu0
    %1014 = vmatpush.bf16.msra.mxu0 %v984
    %1015 = vmatpush.bf16.msra.mxu0 %v983
    %1016 = vmatpush.bf16.msra.mxu0 %v982
    %1017 = vmatpush.bf16.msra.mxu0 %v981
    %1018 = vmatpush.bf16.msra.mxu0 %v980
    %1019 = vmatpush.bf16.msra.mxu0 %v979
    %1020 = vmatpush.bf16.msra.mxu0 %v978
    %1021 = vmatpush.bf16.msra.mxu0 %v977
    %1022 = vmatmul.bf16.gmra.mxu0 %v868
    %v1023 = vpop.f32.mrf.mxu0
    %v1024 = vadd.f32 %v1011, %v1023
    %v1025 = vpop.f32.mrf.mxu0
    %1026 = vdwg.mxu0
    %1027 = vst [vmem:[#allocation14] sm:$0xff] %v1024
    // Predicated region
    $region74: #{tpu_custom_call.1} parent=1 // pred_check
      _
    $region75: #{tpu_custom_call.1} parent=1 // pred_check_branch
      %1029 = sbr.rel (0) target = $region77
    $region76: #{tpu_custom_call.1} parent=1 // pred_region
      %1031 = vsyncadd [#allocation4], 0
      %s1033 = sshll.u32 [#allocation14], 4
      %s1034 = int_to_ptr.vmem [resolvable:$true] %s1033
      %s1035 = sshll.u32 %s11, 4
      %s1036 = int_to_ptr.hbm [resolvable:$true] %s1035
      %1038 = dma.vmem_to_hbm [thread:$0]  %s1034, 128, %s1036, [#allocation4]
    $region77: #{tpu_custom_call.1} parent=1 // pred_fallthru
      _
    // Predicated region
    $region78: #{tpu_custom_call.1} parent=1 // pred_check
      _
    $region79: #{tpu_custom_call.1} parent=1 // pred_check_branch
      %1040 = sbr.rel (0) target = $region81
    $region80: #{tpu_custom_call.1} parent=1 // pred_region
      %1042 = dma.done [#allocation4], 128
    $region81: #{tpu_custom_call.1} parent=1 // pred_fallthru
      _
    %1043 = vsyncpa [#allocation3], 1
    %1044 = vsyncpa [#allocation6], 1
    %1045 = vsyncpa [#allocation9], 1
    %1046 = vsyncpa [#allocation12], 1
    %1047 = vsyncpa [#allocation4], 1

// kernel: tpu_custom_call.1
$region0: #{tpu_custom_call.1}
  #allocation0 [shape = 'u32[]', space=smem, size = 0x4, offset = 0x4, fixed_abs, tag = 'smem constant byte address 0x4 - core index']
  #allocation1 [shape = 'u32[72,128]{1,0:T(1,128)}', space=vmem, size = 0x9000, scoped, tag = 'internal scratch']
  %s0 = inlined_call_operand.hbm [shape: f32[8,128], index: 0, kind: input, shape index: {}]
  %s1 = inlined_call_operand.hbm [shape: bf16[128,128], index: 1, kind: input, shape index: {}]
  %s2 = inlined_call_operand.hbm [shape: f32[1,128], index: 2, kind: input, shape index: {}]
  %s3 = inlined_call_operand.hbm [shape: bf16[128,256], index: 3, kind: input, shape index: {}]
  %s4 = inlined_call_operand.vmem [shape: f32[1,256], index: 4, kind: input, shape index: {}]
  %s5 = inlined_call_operand.hbm [shape: bf16[256,256], index: 5, kind: input, shape index: {}]
  %s6 = inlined_call_operand.vmem [shape: f32[1,256], index: 6, kind: input, shape index: {}]
  %s7 = inlined_call_operand.hbm [shape: bf16[256,256], index: 7, kind: input, shape index: {}]
  %s8 = inlined_call_operand.vmem [shape: f32[1,256], index: 8, kind: input, shape index: {}]
  %s9 = inlined_call_operand.hbm [shape: bf16[256,128], index: 9, kind: input, shape index: {}]
  %s10 = inlined_call_operand.vmem [shape: f32[1,128], index: 10, kind: input, shape index: {}]
  %s11 = inlined_call_operand.hbm [shape: f32[8,128], index: 11, kind: output, shape index: {}]
  %s12 = sld [smem:[#allocation0]]
  $region82: #{tpu_custom_call.1} parent=0
    _
  %s14 = ssub.s32 1, %s12
  %s15 = scalar_select 0, %s14, %s12
  $region1: #{tpu_custom_call.1} parent=0
    #allocation2 [shape = 'u8[4096]{0}', space=vmem, size = 0x1000, scoped, tag = 'input window, operand 0, single buffered']
    #allocation3 [shape = 's32[1]{0}', space=sflag, size = 0x4, scoped, tag = 'scoped memory for tpu_custom_call.1']
    #allocation4 [shape = 's32[1]{0}', space=sflag, size = 0x4, scoped, tag = 'scoped memory for tpu_custom_call.1']
    #allocation5 [shape = 'u8[32768]{0}', space=vmem, size = 0x8000, scoped, tag = 'input window, operand 1, single buffered']
    #allocation6 [shape = 's32[1]{0}', space=sflag, size = 0x4, scoped, tag = 'scoped memory for tpu_custom_call.1']
    #allocation7 [shape = 'u8[512]{0}', space=vmem, size = 0x400, scoped, tag = 'input window, operand 2, single buffered']
    #allocation8 [shape = 'u8[65536]{0}', space=vmem, size = 0x10000, scoped, tag = 'input window, operand 3, single buffered']
    #allocation9 [shape = 's32[1]{0}', space=sflag, size = 0x4, scoped, tag = 'scoped memory for tpu_custom_call.1']
    #allocation10 [shape = 'u8[131072]{0}', space=vmem, size = 0x20000, scoped, tag = 'input window, operand 5, single buffered']
    #allocation11 [shape = 'u8[131072]{0}', space=vmem, size = 0x20000, scoped, tag = 'input window, operand 7, single buffered']
    #allocation12 [shape = 's32[1]{0}', space=sflag, size = 0x4, scoped, tag = 'scoped memory for tpu_custom_call.1']
    #allocation13 [shape = 'u8[65536]{0}', space=vmem, size = 0x10000, scoped, tag = 'input window, operand 9, single buffered']
    #allocation14 [shape = 'u8[4096]{0}', space=vmem, size = 0x1000, scoped, tag = 'output window, operand 0, single buffered']
    %16 = vsyncpa [#allocation3], 0
    %17 = vsyncpa [#allocation6], 0
    %18 = vsyncpa [#allocation9], 0
    %19 = vsyncpa [#allocation12], 0
    %20 = vsyncpa [#allocation4], 0
    // Predicated region
    $region2: #{tpu_custom_call.1} parent=1 // pred_check
      _
    $region3: #{tpu_custom_call.1} parent=1 // pred_check_branch
      %22 = sbr.rel (0) target = $region5
    $region4: #{tpu_custom_call.1} parent=1 // pred_region
      %24 = vsyncadd [#allocation3], 0
      %s26 = sshll.u32 %s0, 4
      %s27 = int_to_ptr.hbm [resolvable:$true] %s26
      %s28 = sshll.u32 [#allocation2], 4
      %s29 = int_to_ptr.vmem [resolvable:$true] %s28
      %31 = dma.hbm_to_vmem [thread:$0]  %s27, 128, %s29, [#allocation3]
    $region5: #{tpu_custom_call.1} parent=1 // pred_fallthru
      _
    // Predicated region
    $region6: #{tpu_custom_call.1} parent=1 // pred_check
      _
    $region7: #{tpu_custom_call.1} parent=1 // pred_check_branch
      %33 = sbr.rel (0) target = $region9
    $region8: #{tpu_custom_call.1} parent=1 // pred_region
      %35 = vsyncadd [#allocation6], 0
      %s36 = sshll.u32 %s1, 4
      %s37 = int_to_ptr.hbm [resolvable:$true] %s36
      %s38 = sshll.u32 [#allocation5], 4
      %s39 = int_to_ptr.vmem [resolvable:$true] %s38
      %44 = dma.hbm_to_vmem [thread:$0]  %s37, 1024, %s39, [#allocation6], 64, 64, 4
    $region9: #{tpu_custom_call.1} parent=1 // pred_fallthru
      _
    // Predicated region
    $region10: #{tpu_custom_call.1} parent=1 // pred_check
      _
    $region11: #{tpu_custom_call.1} parent=1 // pred_check_branch
      %46 = sbr.rel (0) target = $region13
    $region12: #{tpu_custom_call.1} parent=1 // pred_region
      %48 = vsyncadd [#allocation6], 0
      %s50 = sshll.u32 %s2, 4
      %s51 = int_to_ptr.hbm [resolvable:$true] %s50
      %s52 = sshll.u32 [#allocation7], 4
      %s53 = int_to_ptr.vmem [resolvable:$true] %s52
      %55 = dma.hbm_to_vmem [thread:$0]  %s51, 16, %s53, [#allocation6]
    $region13: #{tpu_custom_call.1} parent=1 // pred_fallthru
      _
    // Predicated region
    $region14: #{tpu_custom_call.1} parent=1 // pred_check
      _
    $region15: #{tpu_custom_call.1} parent=1 // pred_check_branch
      %57 = sbr.rel (0) target = $region17
    $region16: #{tpu_custom_call.1} parent=1 // pred_region
      %59 = vsyncadd [#allocation9], 0
      %s60 = sshll.u32 %s3, 4
      %s61 = int_to_ptr.hbm [resolvable:$true] %s60
      %s62 = sshll.u32 [#allocation8], 4
      %s63 = int_to_ptr.vmem [resolvable:$true] %s62
      %68 = dma.hbm_to_vmem [thread:$0]  %s61, 2048, %s63, [#allocation9], 128, 128, 8
    $region17: #{tpu_custom_call.1} parent=1 // pred_fallthru
      _
    // Predicated region
    $region18: #{tpu_custom_call.1} parent=1 // pred_check
      _
    $region19: #{tpu_custom_call.1} parent=1 // pred_check_branch
      %70 = sbr.rel (0) target = $region21
    $region20: #{tpu_custom_call.1} parent=1 // pred_region
      _
    $region21: #{tpu_custom_call.1} parent=1 // pred_fallthru
      _
    // Predicated region
    $region22: #{tpu_custom_call.1} parent=1 // pred_check
      _
    $region23: #{tpu_custom_call.1} parent=1 // pred_check_branch
      %72 = sbr.rel (0) target = $region25
    $region24: #{tpu_custom_call.1} parent=1 // pred_region
      %74 = vsyncadd [#allocation9], 0
      %s75 = sshll.u32 %s5, 4
      %s76 = int_to_ptr.hbm [resolvable:$true] %s75
      %s77 = sshll.u32 [#allocation10], 4
      %s78 = int_to_ptr.vmem [resolvable:$true] %s77
      %83 = dma.hbm_to_vmem [thread:$0]  %s76, 4096, %s78, [#allocation9], 128, 128, 8
    $region25: #{tpu_custom_call.1} parent=1 // pred_fallthru
      _
    // Predicated region
    $region26: #{tpu_custom_call.1} parent=1 // pred_check
      _
    $region27: #{tpu_custom_call.1} parent=1 // pred_check_branch
      %85 = sbr.rel (0) target = $region29
    $region28: #{tpu_custom_call.1} parent=1 // pred_region
      _
    $region29: #{tpu_custom_call.1} parent=1 // pred_fallthru
      _
    // Predicated region
    $region30: #{tpu_custom_call.1} parent=1 // pred_check
      _
    $region31: #{tpu_custom_call.1} parent=1 // pred_check_branch
      %87 = sbr.rel (0) target = $region33
    $region32: #{tpu_custom_call.1} parent=1 // pred_region
      %89 = vsyncadd [#allocation12], 0
      %s90 = sshll.u32 %s7, 4
      %s91 = int_to_ptr.hbm [resolvable:$true] %s90
      %s92 = sshll.u32 [#allocation11], 4
      %s93 = int_to_ptr.vmem [resolvable:$true] %s92
      %98 = dma.hbm_to_vmem [thread:$0]  %s91, 4096, %s93, [#allocation12], 128, 128, 8
    $region33: #{tpu_custom_call.1} parent=1 // pred_fallthru
      _
    // Predicated region
    $region34: #{tpu_custom_call.1} parent=1 // pred_check
      _
    $region35: #{tpu_custom_call.1} parent=1 // pred_check_branch
      %100 = sbr.rel (0) target = $region37
    $region36: #{tpu_custom_call.1} parent=1 // pred_region
      _
    $region37: #{tpu_custom_call.1} parent=1 // pred_fallthru
      _
    // Predicated region
    $region38: #{tpu_custom_call.1} parent=1 // pred_check
      _
    $region39: #{tpu_custom_call.1} parent=1 // pred_check_branch
      %102 = sbr.rel (0) target = $region41
    $region40: #{tpu_custom_call.1} parent=1 // pred_region
      %104 = vsyncadd [#allocation12], 0
      %s105 = sshll.u32 %s9, 4
      %s106 = int_to_ptr.hbm [resolvable:$true] %s105
      %s107 = sshll.u32 [#allocation13], 4
      %s108 = int_to_ptr.vmem [resolvable:$true] %s107
      %113 = dma.hbm_to_vmem [thread:$0]  %s106, 2048, %s108, [#allocation12], 64, 64, 4
    $region41: #{tpu_custom_call.1} parent=1 // pred_fallthru
      _
    // Predicated region
    $region42: #{tpu_custom_call.1} parent=1 // pred_check
      _
    $region43: #{tpu_custom_call.1} parent=1 // pred_check_branch
      %115 = sbr.rel (0) target = $region45
    $region44: #{tpu_custom_call.1} parent=1 // pred_region
      _
    $region45: #{tpu_custom_call.1} parent=1 // pred_fallthru
      _
    // Predicated region
    $region46: #{tpu_custom_call.1} parent=1 // pred_check
      _
    $region47: #{tpu_custom_call.1} parent=1 // pred_check_branch
      %117 = sbr.rel (0) target = $region49
    $region48: #{tpu_custom_call.1} parent=1 // pred_region
      %119 = dma.done [#allocation3], 128
    $region49: #{tpu_custom_call.1} parent=1 // pred_fallthru
      _
    // Predicated region
    $region50: #{tpu_custom_call.1} parent=1 // pred_check
      _
    $region51: #{tpu_custom_call.1} parent=1 // pred_check_branch
      %121 = sbr.rel (0) target = $region53
    $region52: #{tpu_custom_call.1} parent=1 // pred_region
      %123 = dma.done [#allocation6], 1024
    $region53: #{tpu_custom_call.1} parent=1 // pred_fallthru
      _
    // Predicated region
    $region54: #{tpu_custom_call.1} parent=1 // pred_check
      _
    $region55: #{tpu_custom_call.1} parent=1 // pred_check_branch
      %125 = sbr.rel (0) target = $region57
    $region56: #{tpu_custom_call.1} parent=1 // pred_region
      %127 = dma.done [#allocation6], 16
    $region57: #{tpu_custom_call.1} parent=1 // pred_fallthru
      _
    // Predicated region
    $region58: #{tpu_custom_call.1} parent=1 // pred_check
      _
    $region59: #{tpu_custom_call.1} parent=1 // pred_check_branch
      %129 = sbr.rel (0) target = $region61
    $region60: #{tpu_custom_call.1} parent=1 // pred_region
      %131 = dma.done [#allocation9], 2048
    $region61: #{tpu_custom_call.1} parent=1 // pred_fallthru
      _
    // Predicated region
    $region62: #{tpu_custom_call.1} parent=1 // pred_check
      _
    $region63: #{tpu_custom_call.1} parent=1 // pred_check_branch
      %133 = sbr.rel (0) target = $region65
    $region64: #{tpu_custom_call.1} parent=1 // pred_region
      %135 = dma.done [#allocation9], 4096
    $region65: #{tpu_custom_call.1} parent=1 // pred_fallthru
      _
    // Predicated region
    $region66: #{tpu_custom_call.1} parent=1 // pred_check
      _
    $region67: #{tpu_custom_call.1} parent=1 // pred_check_branch
      %137 = sbr.rel (0) target = $region69
    $region68: #{tpu_custom_call.1} parent=1 // pred_region
      %139 = dma.done [#allocation12], 4096
    $region69: #{tpu_custom_call.1} parent=1 // pred_fallthru
      _
    // Predicated region
    $region70: #{tpu_custom_call.1} parent=1 // pred_check
      _
    $region71: #{tpu_custom_call.1} parent=1 // pred_check_branch
      %141 = sbr.rel (0) target = $region73
    $region72: #{tpu_custom_call.1} parent=1 // pred_region
      %143 = dma.done [#allocation12], 2048
    $region73: #{tpu_custom_call.1} parent=1 // pred_fallthru
      _
    %v144 = vld [vmem:[#allocation2] sm:$0xff]
    %v145 = vpack.c.bf16 %v144, %v144
    %v146 = vld [vmem:[#allocation5] sm:$0xf]
    %v147 = vld [vmem:[#allocation5 + $0x4] sm:$0xf]
    %v148 = vld [vmem:[#allocation5 + $0x8] sm:$0xf]
    %v149 = vld [vmem:[#allocation5 + $0xc] sm:$0xf]
    %v150 = vld [vmem:[#allocation5 + $0x10] sm:$0xf]
    %v151 = vld [vmem:[#allocation5 + $0x14] sm:$0xf]
    %v152 = vld [vmem:[#allocation5 + $0x18] sm:$0xf]
    %v153 = vld [vmem:[#allocation5 + $0x1c] sm:$0xf]
    %v154 = vld [vmem:[#allocation5 + $0x20] sm:$0xf]
    %v155 = vld [vmem:[#allocation5 + $0x24] sm:$0xf]
    %v156 = vld [vmem:[#allocation5 + $0x28] sm:$0xf]
    %v157 = vld [vmem:[#allocation5 + $0x2c] sm:$0xf]
    %v158 = vld [vmem:[#allocation5 + $0x30] sm:$0xf]
    %v159 = vld [vmem:[#allocation5 + $0x34] sm:$0xf]
    %v160 = vld [vmem:[#allocation5 + $0x38] sm:$0xf]
    %v161 = vld [vmem:[#allocation5 + $0x3c] sm:$0xf]
    %v162 = vld [vmem:[#allocation7] sm:$0x1]
    %v164 = vperm.slane %v162, 0
    %v182 = vunpack.c.l.b16 %v146
    %v183 = vunpack.c.l.b16 %v147
    %v184 = vunpack.c.l.b16 %v148
    %v185 = vunpack.c.l.b16 %v149
    %v186 = vunpack.c.l.b16 %v150
    %v187 = vunpack.c.l.b16 %v151
    %v188 = vunpack.c.l.b16 %v152
    %v189 = vunpack.c.l.b16 %v153
    %v190 = vunpack.c.l.b16 %v154
    %v191 = vunpack.c.l.b16 %v155
    %v192 = vunpack.c.l.b16 %v156
    %v193 = vunpack.c.l.b16 %v157
    %v194 = vunpack.c.l.b16 %v158
    %v195 = vunpack.c.l.b16 %v159
    %v196 = vunpack.c.l.b16 %v160
    %v197 = vunpack.c.l.b16 %v161
    %v198 = vpack.c.b16 %v183, %v182
    %v199 = vpack.c.b16 %v185, %v184
    %v200 = vpack.c.b16 %v187, %v186
    %v201 = vpack.c.b16 %v189, %v188
    %v202 = vpack.c.b16 %v191, %v190
    %v203 = vpack.c.b16 %v193, %v192
    %v204 = vpack.c.b16 %v195, %v194
    %v205 = vpack.c.b16 %v197, %v196
    %214 = vmatpush.bf16.msra.mxu0 %v205
    %215 = vmatpush.bf16.msra.mxu0 %v204
    %216 = vmatpush.bf16.msra.mxu0 %v203
    %217 = vmatpush.bf16.msra.mxu0 %v202
    %218 = vmatpush.bf16.msra.mxu0 %v201
    %219 = vmatpush.bf16.msra.mxu0 %v200
    %220 = vmatpush.bf16.msra.mxu0 %v199
    %221 = vmatpush.bf16.msra.mxu0 %v198
    %222 = vmatmul.bf16.gmra.mxu0 %v145
    %v223 = vpop.f32.mrf.mxu0
    %v224 = vadd.f32 %v164, %v223
    %v225 = vpop.f32.mrf.mxu0
    %226 = vdwg.mxu0
    %v227 = vmax.f32 %v224, 0.0
    %v228 = vpack.c.bf16 %v227, %v227
    %v229 = vld [vmem:[#allocation8] sm:$0xff]
    %v230 = vld [vmem:[#allocation8 + $0x8] sm:$0xff]
    %v231 = vld [vmem:[#allocation8 + $0x10] sm:$0xff]
    %v232 = vld [vmem:[#allocation8 + $0x18] sm:$0xff]
    %v233 = vld [vmem:[#allocation8 + $0x20] sm:$0xff]
    %v234 = vld [vmem:[#allocation8 + $0x28] sm:$0xff]
    %v235 = vld [vmem:[#allocation8 + $0x30] sm:$0xff]
    %v236 = vld [vmem:[#allocation8 + $0x38] sm:$0xff]
    %v237 = vld [vmem:[#allocation8 + $0x40] sm:$0xff]
    %v238 = vld [vmem:[#allocation8 + $0x48] sm:$0xff]
    %v239 = vld [vmem:[#allocation8 + $0x50] sm:$0xff]
    %v240 = vld [vmem:[#allocation8 + $0x58] sm:$0xff]
    %v241 = vld [vmem:[#allocation8 + $0x60] sm:$0xff]
    %v242 = vld [vmem:[#allocation8 + $0x68] sm:$0xff]
    %v243 = vld [vmem:[#allocation8 + $0x70] sm:$0xff]
    %v244 = vld [vmem:[#allocation8 + $0x78] sm:$0xff]
    %v245 = vld [vmem:[%s4] sm:$0x3]
    %v247 = vperm.slane %v245, 0
    %v248 = vperm.slane %v245, 1
    %v267 = vunpack.c.l.b16 %v229
    %v268 = vunpack.c.h.b16 %v229
    %v269 = vunpack.c.l.b16 %v230
    %v270 = vunpack.c.h.b16 %v230
    %v271 = vunpack.c.l.b16 %v231
    %v272 = vunpack.c.h.b16 %v231
    %v273 = vunpack.c.l.b16 %v232
    %v274 = vunpack.c.h.b16 %v232
    %v275 = vunpack.c.l.b16 %v233
    %v276 = vunpack.c.h.b16 %v233
    %v277 = vunpack.c.l.b16 %v234
    %v278 = vunpack.c.h.b16 %v234
    %v279 = vunpack.c.l.b16 %v235
    %v280 = vunpack.c.h.b16 %v235
    %v281 = vunpack.c.l.b16 %v236
    %v282 = vunpack.c.h.b16 %v236
    %v283 = vunpack.c.l.b16 %v237
    %v284 = vunpack.c.h.b16 %v237
    %v285 = vunpack.c.l.b16 %v238
    %v286 = vunpack.c.h.b16 %v238
    %v287 = vunpack.c.l.b16 %v239
    %v288 = vunpack.c.h.b16 %v239
    %v289 = vunpack.c.l.b16 %v240
    %v290 = vunpack.c.h.b16 %v240
    %v291 = vunpack.c.l.b16 %v241
    %v292 = vunpack.c.h.b16 %v241
    %v293 = vunpack.c.l.b16 %v242
    %v294 = vunpack.c.h.b16 %v242
    %v295 = vunpack.c.l.b16 %v243
    %v296 = vunpack.c.h.b16 %v243
    %v297 = vunpack.c.l.b16 %v244
    %v298 = vunpack.c.h.b16 %v244
    %v299 = vpack.c.b16 %v269, %v267
    %v300 = vpack.c.b16 %v270, %v268
    %v301 = vpack.c.b16 %v273, %v271
    %v302 = vpack.c.b16 %v274, %v272
    %v303 = vpack.c.b16 %v277, %v275
    %v304 = vpack.c.b16 %v278, %v276
    %v305 = vpack.c.b16 %v281, %v279
    %v306 = vpack.c.b16 %v282, %v280
    %v307 = vpack.c.b16 %v285, %v283
    %v308 = vpack.c.b16 %v286, %v284
    %v309 = vpack.c.b16 %v289, %v287
    %v310 = vpack.c.b16 %v290, %v288
    %v311 = vpack.c.b16 %v293, %v291
    %v312 = vpack.c.b16 %v294, %v292
    %v313 = vpack.c.b16 %v297, %v295
    %v314 = vpack.c.b16 %v298, %v296
    %331 = vmatpush.bf16.msra.mxu0 %v313
    %332 = vmatpush.bf16.msra.mxu0 %v311
    %333 = vmatpush.bf16.msra.mxu0 %v309
    %334 = vmatpush.bf16.msra.mxu0 %v307
    %335 = vmatpush.bf16.msra.mxu0 %v305
    %336 = vmatpush.bf16.msra.mxu0 %v303
    %337 = vmatpush.bf16.msra.mxu0 %v301
    %338 = vmatpush.bf16.msra.mxu0 %v299
    %339 = vmatmul.bf16.gmra.mxu0 %v228
    %v340 = vpop.f32.mrf.mxu0
    %v341 = vadd.f32 %v247, %v340
    %v342 = vpop.f32.mrf.mxu0
    %343 = vdwg.mxu0
    %344 = vmatpush.bf16.msra.mxu0 %v314
    %345 = vmatpush.bf16.msra.mxu0 %v312
    %346 = vmatpush.bf16.msra.mxu0 %v310
    %347 = vmatpush.bf16.msra.mxu0 %v308
    %348 = vmatpush.bf16.msra.mxu0 %v306
    %349 = vmatpush.bf16.msra.mxu0 %v304
    %350 = vmatpush.bf16.msra.mxu0 %v302
    %351 = vmatpush.bf16.msra.mxu0 %v300
    %352 = vmatmul.bf16.gmra.mxu0 %v228
    %v353 = vpop.f32.mrf.mxu0
    %v354 = vadd.f32 %v248, %v353
    %v355 = vpop.f32.mrf.mxu0
    %356 = vdwg.mxu0
    %v357 = vmax.f32 %v341, 0.0
    %v358 = vmax.f32 %v354, 0.0
    %v359 = vpack.c.bf16 %v357, %v357
    %v360 = vpack.c.bf16 %v358, %v358
    %v361 = vld [vmem:[#allocation10] sm:$0xff]
    %v362 = vld [vmem:[#allocation10 + $0x8] sm:$0xff]
    %v363 = vld [vmem:[#allocation10 + $0x10] sm:$0xff]
    %v364 = vld [vmem:[#allocation10 + $0x18] sm:$0xff]
    %v365 = vld [vmem:[#allocation10 + $0x20] sm:$0xff]
    %v366 = vld [vmem:[#allocation10 + $0x28] sm:$0xff]
    %v367 = vld [vmem:[#allocation10 + $0x30] sm:$0xff]
    %v368 = vld [vmem:[#allocation10 + $0x38] sm:$0xff]
    %v369 = vld [vmem:[#allocation10 + $0x40] sm:$0xff]
    %v370 = vld [vmem:[#allocation10 + $0x48] sm:$0xff]
    %v371 = vld [vmem:[#allocation10 + $0x50] sm:$0xff]
    %v372 = vld [vmem:[#allocation10 + $0x58] sm:$0xff]
    %v373 = vld [vmem:[#allocation10 + $0x60] sm:$0xff]
    %v374 = vld [vmem:[#allocation10 + $0x68] sm:$0xff]
    %v375 = vld [vmem:[#allocation10 + $0x70] sm:$0xff]
    %v376 = vld [vmem:[#allocation10 + $0x78] sm:$0xff]
    %v377 = vld [vmem:[#allocation10 + $0x80] sm:$0xff]
    %v378 = vld [vmem:[#allocation10 + $0x88] sm:$0xff]
    %v379 = vld [vmem:[#allocation10 + $0x90] sm:$0xff]
    %v380 = vld [vmem:[#allocation10 + $0x98] sm:$0xff]
    %v381 = vld [vmem:[#allocation10 + $0xa0] sm:$0xff]
    %v382 = vld [vmem:[#allocation10 + $0xa8] sm:$0xff]
    %v383 = vld [vmem:[#allocation10 + $0xb0] sm:$0xff]
    %v384 = vld [vmem:[#allocation10 + $0xb8] sm:$0xff]
    %v385 = vld [vmem:[#allocation10 + $0xc0] sm:$0xff]
    %v386 = vld [vmem:[#allocation10 + $0xc8] sm:$0xff]
    %v387 = vld [vmem:[#allocation10 + $0xd0] sm:$0xff]
    %v388 = vld [vmem:[#allocation10 + $0xd8] sm:$0xff]
    %v389 = vld [vmem:[#allocation10 + $0xe0] sm:$0xff]
    %v390 = vld [vmem:[#allocation10 + $0xe8] sm:$0xff]
    %v391 = vld [vmem:[#allocation10 + $0xf0] sm:$0xff]
    %v392 = vld [vmem:[#allocation10 + $0xf8] sm:$0xff]
    %v393 = vld [vmem:[%s6] sm:$0x3]
    %v395 = vperm.slane %v393, 0
    %v396 = vperm.slane %v393, 1
    %v431 = vunpack.c.l.b16 %v361
    %v432 = vunpack.c.h.b16 %v361
    %v433 = vunpack.c.l.b16 %v362
    %v434 = vunpack.c.h.b16 %v362
    %v435 = vunpack.c.l.b16 %v363
    %v436 = vunpack.c.h.b16 %v363
    %v437 = vunpack.c.l.b16 %v364
    %v438 = vunpack.c.h.b16 %v364
    %v439 = vunpack.c.l.b16 %v365
    %v440 = vunpack.c.h.b16 %v365
    %v441 = vunpack.c.l.b16 %v366
    %v442 = vunpack.c.h.b16 %v366
    %v443 = vunpack.c.l.b16 %v367
    %v444 = vunpack.c.h.b16 %v367
    %v445 = vunpack.c.l.b16 %v368
    %v446 = vunpack.c.h.b16 %v368
    %v447 = vunpack.c.l.b16 %v369
    %v448 = vunpack.c.h.b16 %v369
    %v449 = vunpack.c.l.b16 %v370
    %v450 = vunpack.c.h.b16 %v370
    %v451 = vunpack.c.l.b16 %v371
    %v452 = vunpack.c.h.b16 %v371
    %v453 = vunpack.c.l.b16 %v372
    %v454 = vunpack.c.h.b16 %v372
    %v455 = vunpack.c.l.b16 %v373
    %v456 = vunpack.c.h.b16 %v373
    %v457 = vunpack.c.l.b16 %v374
    %v458 = vunpack.c.h.b16 %v374
    %v459 = vunpack.c.l.b16 %v375
    %v460 = vunpack.c.h.b16 %v375
    %v461 = vunpack.c.l.b16 %v376
    %v462 = vunpack.c.h.b16 %v376
    %v463 = vunpack.c.l.b16 %v377
    %v464 = vunpack.c.h.b16 %v377
    %v465 = vunpack.c.l.b16 %v378
    %v466 = vunpack.c.h.b16 %v378
    %v467 = vunpack.c.l.b16 %v379
    %v468 = vunpack.c.h.b16 %v379
    %v469 = vunpack.c.l.b16 %v380
    %v470 = vunpack.c.h.b16 %v380
    %v471 = vunpack.c.l.b16 %v381
    %v472 = vunpack.c.h.b16 %v381
    %v473 = vunpack.c.l.b16 %v382
    %v474 = vunpack.c.h.b16 %v382
    %v475 = vunpack.c.l.b16 %v383
    %v476 = vunpack.c.h.b16 %v383
    %v477 = vunpack.c.l.b16 %v384
    %v478 = vunpack.c.h.b16 %v384
    %v479 = vunpack.c.l.b16 %v385
    %v480 = vunpack.c.h.b16 %v385
    %v481 = vunpack.c.l.b16 %v386
    %v482 = vunpack.c.h.b16 %v386
    %v483 = vunpack.c.l.b16 %v387
    %v484 = vunpack.c.h.b16 %v387
    %v485 = vunpack.c.l.b16 %v388
    %v486 = vunpack.c.h.b16 %v388
    %v487 = vunpack.c.l.b16 %v389
    %v488 = vunpack.c.h.b16 %v389
    %v489 = vunpack.c.l.b16 %v390
    %v490 = vunpack.c.h.b16 %v390
    %v491 = vunpack.c.l.b16 %v391
    %v492 = vunpack.c.h.b16 %v391
    %v493 = vunpack.c.l.b16 %v392
    %v494 = vunpack.c.h.b16 %v392
    %v495 = vpack.c.b16 %v433, %v431
    %v496 = vpack.c.b16 %v434, %v432
    %v497 = vpack.c.b16 %v437, %v435
    %v498 = vpack.c.b16 %v438, %v436
    %v499 = vpack.c.b16 %v441, %v439
    %v500 = vpack.c.b16 %v442, %v440
    %v501 = vpack.c.b16 %v445, %v443
    %v502 = vpack.c.b16 %v446, %v444
    %v503 = vpack.c.b16 %v449, %v447
    %v504 = vpack.c.b16 %v450, %v448
    %v505 = vpack.c.b16 %v453, %v451
    %v506 = vpack.c.b16 %v454, %v452
    %v507 = vpack.c.b16 %v457, %v455
    %v508 = vpack.c.b16 %v458, %v456
    %v509 = vpack.c.b16 %v461, %v459
    %v510 = vpack.c.b16 %v462, %v460
    %v511 = vpack.c.b16 %v465, %v463
    %v512 = vpack.c.b16 %v466, %v464
    %v513 = vpack.c.b16 %v469, %v467
    %v514 = vpack.c.b16 %v470, %v468
    %v515 = vpack.c.b16 %v473, %v471
    %v516 = vpack.c.b16 %v474, %v472
    %v517 = vpack.c.b16 %v477, %v475
    %v518 = vpack.c.b16 %v478, %v476
    %v519 = vpack.c.b16 %v481, %v479
    %v520 = vpack.c.b16 %v482, %v480
    %v521 = vpack.c.b16 %v485, %v483
    %v522 = vpack.c.b16 %v486, %v484
    %v523 = vpack.c.b16 %v489, %v487
    %v524 = vpack.c.b16 %v490, %v488
    %v525 = vpack.c.b16 %v493, %v491
    %v526 = vpack.c.b16 %v494, %v492
    %559 = vmatpush.bf16.msra.mxu0 %v509
    %560 = vmatpush.bf16.msra.mxu0 %v507
    %561 = vmatpush.bf16.msra.mxu0 %v505
    %562 = vmatpush.bf16.msra.mxu0 %v503
    %563 = vmatpush.bf16.msra.mxu0 %v501
    %564 = vmatpush.bf16.msra.mxu0 %v499
    %565 = vmatpush.bf16.msra.mxu0 %v497
    %566 = vmatpush.bf16.msra.mxu0 %v495
    %567 = vmatmul.bf16.gmra.mxu0 %v359
    %v568 = vpop.f32.mrf.mxu0
    %v569 = vadd.f32 %v395, %v568
    %v570 = vpop.f32.mrf.mxu0
    %571 = vdwg.mxu0
    %572 = vmatpush.bf16.msra.mxu0 %v525
    %573 = vmatpush.bf16.msra.mxu0 %v523
    %574 = vmatpush.bf16.msra.mxu0 %v521
    %575 = vmatpush.bf16.msra.mxu0 %v519
    %576 = vmatpush.bf16.msra.mxu0 %v517
    %577 = vmatpush.bf16.msra.mxu0 %v515
    %578 = vmatpush.bf16.msra.mxu0 %v513
    %579 = vmatpush.bf16.msra.mxu0 %v511
    %580 = vmatmul.bf16.gmra.mxu0 %v360
    %v581 = vpop.f32.mrf.mxu0
    %v582 = vadd.f32 %v569, %v581
    %v583 = vpop.f32.mrf.mxu0
    %584 = vdwg.mxu0
    %585 = vmatpush.bf16.msra.mxu0 %v510
    %586 = vmatpush.bf16.msra.mxu0 %v508
    %587 = vmatpush.bf16.msra.mxu0 %v506
    %588 = vmatpush.bf16.msra.mxu0 %v504
    %589 = vmatpush.bf16.msra.mxu0 %v502
    %590 = vmatpush.bf16.msra.mxu0 %v500
    %591 = vmatpush.bf16.msra.mxu0 %v498
    %592 = vmatpush.bf16.msra.mxu0 %v496
    %593 = vmatmul.bf16.gmra.mxu0 %v359
    %v594 = vpop.f32.mrf.mxu0
    %v595 = vadd.f32 %v396, %v594
    %v596 = vpop.f32.mrf.mxu0
    %597 = vdwg.mxu0
    %598 = vmatpush.bf16.msra.mxu0 %v526
    %599 = vmatpush.bf16.msra.mxu0 %v524
    %600 = vmatpush.bf16.msra.mxu0 %v522
    %601 = vmatpush.bf16.msra.mxu0 %v520
    %602 = vmatpush.bf16.msra.mxu0 %v518
    %603 = vmatpush.bf16.msra.mxu0 %v516
    %604 = vmatpush.bf16.msra.mxu0 %v514
    %605 = vmatpush.bf16.msra.mxu0 %v512
    %606 = vmatmul.bf16.gmra.mxu0 %v360
    %v607 = vpop.f32.mrf.mxu0
    %v608 = vadd.f32 %v595, %v607
    %v609 = vpop.f32.mrf.mxu0
    %610 = vdwg.mxu0
    %v611 = vmax.f32 %v582, 0.0
    %v612 = vmax.f32 %v608, 0.0
    %v613 = vpack.c.bf16 %v611, %v611
    %v614 = vpack.c.bf16 %v612, %v612
    %v615 = vld [vmem:[#allocation11] sm:$0xff]
    %v616 = vld [vmem:[#allocation11 + $0x8] sm:$0xff]
    %v617 = vld [vmem:[#allocation11 + $0x10] sm:$0xff]
    %v618 = vld [vmem:[#allocation11 + $0x18] sm:$0xff]
    %v619 = vld [vmem:[#allocation11 + $0x20] sm:$0xff]
    %v620 = vld [vmem:[#allocation11 + $0x28] sm:$0xff]
    %v621 = vld [vmem:[#allocation11 + $0x30] sm:$0xff]
    %v622 = vld [vmem:[#allocation11 + $0x38] sm:$0xff]
    %v623 = vld [vmem:[#allocation11 + $0x40] sm:$0xff]
    %v624 = vld [vmem:[#allocation11 + $0x48] sm:$0xff]
    %v625 = vld [vmem:[#allocation11 + $0x50] sm:$0xff]
    %v626 = vld [vmem:[#allocation11 + $0x58] sm:$0xff]
    %v627 = vld [vmem:[#allocation11 + $0x60] sm:$0xff]
    %v628 = vld [vmem:[#allocation11 + $0x68] sm:$0xff]
    %v629 = vld [vmem:[#allocation11 + $0x70] sm:$0xff]
    %v630 = vld [vmem:[#allocation11 + $0x78] sm:$0xff]
    %v631 = vld [vmem:[#allocation11 + $0x80] sm:$0xff]
    %v632 = vld [vmem:[#allocation11 + $0x88] sm:$0xff]
    %v633 = vld [vmem:[#allocation11 + $0x90] sm:$0xff]
    %v634 = vld [vmem:[#allocation11 + $0x98] sm:$0xff]
    %v635 = vld [vmem:[#allocation11 + $0xa0] sm:$0xff]
    %v636 = vld [vmem:[#allocation11 + $0xa8] sm:$0xff]
    %v637 = vld [vmem:[#allocation11 + $0xb0] sm:$0xff]
    %v638 = vld [vmem:[#allocation11 + $0xb8] sm:$0xff]
    %v639 = vld [vmem:[#allocation11 + $0xc0] sm:$0xff]
    %v640 = vld [vmem:[#allocation11 + $0xc8] sm:$0xff]
    %v641 = vld [vmem:[#allocation11 + $0xd0] sm:$0xff]
    %v642 = vld [vmem:[#allocation11 + $0xd8] sm:$0xff]
    %v643 = vld [vmem:[#allocation11 + $0xe0] sm:$0xff]
    %v644 = vld [vmem:[#allocation11 + $0xe8] sm:$0xff]
    %v645 = vld [vmem:[#allocation11 + $0xf0] sm:$0xff]
    %v646 = vld [vmem:[#allocation11 + $0xf8] sm:$0xff]
    %v647 = vld [vmem:[%s8] sm:$0x3]
    %v649 = vperm.slane %v647, 0
    %v650 = vperm.slane %v647, 1
    %v685 = vunpack.c.l.b16 %v615
    %v686 = vunpack.c.h.b16 %v615
    %v687 = vunpack.c.l.b16 %v616
    %v688 = vunpack.c.h.b16 %v616
    %v689 = vunpack.c.l.b16 %v617
    %v690 = vunpack.c.h.b16 %v617
    %v691 = vunpack.c.l.b16 %v618
    %v692 = vunpack.c.h.b16 %v618
    %v693 = vunpack.c.l.b16 %v619
    %v694 = vunpack.c.h.b16 %v619
    %v695 = vunpack.c.l.b16 %v620
    %v696 = vunpack.c.h.b16 %v620
    %v697 = vunpack.c.l.b16 %v621
    %v698 = vunpack.c.h.b16 %v621
    %v699 = vunpack.c.l.b16 %v622
    %v700 = vunpack.c.h.b16 %v622
    %v701 = vunpack.c.l.b16 %v623
    %v702 = vunpack.c.h.b16 %v623
    %v703 = vunpack.c.l.b16 %v624
    %v704 = vunpack.c.h.b16 %v624
    %v705 = vunpack.c.l.b16 %v625
    %v706 = vunpack.c.h.b16 %v625
    %v707 = vunpack.c.l.b16 %v626
    %v708 = vunpack.c.h.b16 %v626
    %v709 = vunpack.c.l.b16 %v627
    %v710 = vunpack.c.h.b16 %v627
    %v711 = vunpack.c.l.b16 %v628
    %v712 = vunpack.c.h.b16 %v628
    %v713 = vunpack.c.l.b16 %v629
    %v714 = vunpack.c.h.b16 %v629
    %v715 = vunpack.c.l.b16 %v630
    %v716 = vunpack.c.h.b16 %v630
    %v717 = vunpack.c.l.b16 %v631
    %v718 = vunpack.c.h.b16 %v631
    %v719 = vunpack.c.l.b16 %v632
    %v720 = vunpack.c.h.b16 %v632
    %v721 = vunpack.c.l.b16 %v633
    %v722 = vunpack.c.h.b16 %v633
    %v723 = vunpack.c.l.b16 %v634
    %v724 = vunpack.c.h.b16 %v634
    %v725 = vunpack.c.l.b16 %v635
    %v726 = vunpack.c.h.b16 %v635
    %v727 = vunpack.c.l.b16 %v636
    %v728 = vunpack.c.h.b16 %v636
    %v729 = vunpack.c.l.b16 %v637
    %v730 = vunpack.c.h.b16 %v637
    %v731 = vunpack.c.l.b16 %v638
    %v732 = vunpack.c.h.b16 %v638
    %v733 = vunpack.c.l.b16 %v639
    %v734 = vunpack.c.h.b16 %v639
    %v735 = vunpack.c.l.b16 %v640
    %v736 = vunpack.c.h.b16 %v640
    %v737 = vunpack.c.l.b16 %v641
    %v738 = vunpack.c.h.b16 %v641
    %v739 = vunpack.c.l.b16 %v642
    %v740 = vunpack.c.h.b16 %v642
    %v741 = vunpack.c.l.b16 %v643
    %v742 = vunpack.c.h.b16 %v643
    %v743 = vunpack.c.l.b16 %v644
    %v744 = vunpack.c.h.b16 %v644
    %v745 = vunpack.c.l.b16 %v645
    %v746 = vunpack.c.h.b16 %v645
    %v747 = vunpack.c.l.b16 %v646
    %v748 = vunpack.c.h.b16 %v646
    %v749 = vpack.c.b16 %v687, %v685
    %v750 = vpack.c.b16 %v688, %v686
    %v751 = vpack.c.b16 %v691, %v689
    %v752 = vpack.c.b16 %v692, %v690
    %v753 = vpack.c.b16 %v695, %v693
    %v754 = vpack.c.b16 %v696, %v694
    %v755 = vpack.c.b16 %v699, %v697
    %v756 = vpack.c.b16 %v700, %v698
    %v757 = vpack.c.b16 %v703, %v701
    %v758 = vpack.c.b16 %v704, %v702
    %v759 = vpack.c.b16 %v707, %v705
    %v760 = vpack.c.b16 %v708, %v706
    %v761 = vpack.c.b16 %v711, %v709
    %v762 = vpack.c.b16 %v712, %v710
    %v763 = vpack.c.b16 %v715, %v713
    %v764 = vpack.c.b16 %v716, %v714
    %v765 = vpack.c.b16 %v719, %v717
    %v766 = vpack.c.b16 %v720, %v718
    %v767 = vpack.c.b16 %v723, %v721
    %v768 = vpack.c.b16 %v724, %v722
    %v769 = vpack.c.b16 %v727, %v725
    %v770 = vpack.c.b16 %v728, %v726
    %v771 = vpack.c.b16 %v731, %v729
    %v772 = vpack.c.b16 %v732, %v730
    %v773 = vpack.c.b16 %v735, %v733
    %v774 = vpack.c.b16 %v736, %v734
    %v775 = vpack.c.b16 %v739, %v737
    %v776 = vpack.c.b16 %v740, %v738
    %v777 = vpack.c.b16 %v743, %v741
    %v778 = vpack.c.b16 %v744, %v742
    %v779 = vpack.c.b16 %v747, %v745
    %v780 = vpack.c.b16 %v748, %v746
    %813 = vmatpush.bf16.msra.mxu0 %v763
    %814 = vmatpush.bf16.msra.mxu0 %v761
    %815 = vmatpush.bf16.msra.mxu0 %v759
    %816 = vmatpush.bf16.msra.mxu0 %v757
    %817 = vmatpush.bf16.msra.mxu0 %v755
    %818 = vmatpush.bf16.msra.mxu0 %v753
    %819 = vmatpush.bf16.msra.mxu0 %v751
    %820 = vmatpush.bf16.msra.mxu0 %v749
    %821 = vmatmul.bf16.gmra.mxu0 %v613
    %v822 = vpop.f32.mrf.mxu0
    %v823 = vadd.f32 %v649, %v822
    %v824 = vpop.f32.mrf.mxu0
    %825 = vdwg.mxu0
    %826 = vmatpush.bf16.msra.mxu0 %v779
    %827 = vmatpush.bf16.msra.mxu0 %v777
    %828 = vmatpush.bf16.msra.mxu0 %v775
    %829 = vmatpush.bf16.msra.mxu0 %v773
    %830 = vmatpush.bf16.msra.mxu0 %v771
    %831 = vmatpush.bf16.msra.mxu0 %v769
    %832 = vmatpush.bf16.msra.mxu0 %v767
    %833 = vmatpush.bf16.msra.mxu0 %v765
    %834 = vmatmul.bf16.gmra.mxu0 %v614
    %v835 = vpop.f32.mrf.mxu0
    %v836 = vadd.f32 %v823, %v835
    %v837 = vpop.f32.mrf.mxu0
    %838 = vdwg.mxu0
    %839 = vmatpush.bf16.msra.mxu0 %v764
    %840 = vmatpush.bf16.msra.mxu0 %v762
    %841 = vmatpush.bf16.msra.mxu0 %v760
    %842 = vmatpush.bf16.msra.mxu0 %v758
    %843 = vmatpush.bf16.msra.mxu0 %v756
    %844 = vmatpush.bf16.msra.mxu0 %v754
    %845 = vmatpush.bf16.msra.mxu0 %v752
    %846 = vmatpush.bf16.msra.mxu0 %v750
    %847 = vmatmul.bf16.gmra.mxu0 %v613
    %v848 = vpop.f32.mrf.mxu0
    %v849 = vadd.f32 %v650, %v848
    %v850 = vpop.f32.mrf.mxu0
    %851 = vdwg.mxu0
    %852 = vmatpush.bf16.msra.mxu0 %v780
    %853 = vmatpush.bf16.msra.mxu0 %v778
    %854 = vmatpush.bf16.msra.mxu0 %v776
    %855 = vmatpush.bf16.msra.mxu0 %v774
    %856 = vmatpush.bf16.msra.mxu0 %v772
    %857 = vmatpush.bf16.msra.mxu0 %v770
    %858 = vmatpush.bf16.msra.mxu0 %v768
    %859 = vmatpush.bf16.msra.mxu0 %v766
    %860 = vmatmul.bf16.gmra.mxu0 %v614
    %v861 = vpop.f32.mrf.mxu0
    %v862 = vadd.f32 %v849, %v861
    %v863 = vpop.f32.mrf.mxu0
    %864 = vdwg.mxu0
    %v865 = vmax.f32 %v836, 0.0
    %v866 = vmax.f32 %v862, 0.0
    %v867 = vpack.c.bf16 %v865, %v865
    %v868 = vpack.c.bf16 %v866, %v866
    %v869 = vld [vmem:[#allocation13] sm:$0xf]
    %v870 = vld [vmem:[#allocation13 + $0x4] sm:$0xf]
    %v871 = vld [vmem:[#allocation13 + $0x8] sm:$0xf]
    %v872 = vld [vmem:[#allocation13 + $0xc] sm:$0xf]
    %v873 = vld [vmem:[#allocation13 + $0x10] sm:$0xf]
    %v874 = vld [vmem:[#allocation13 + $0x14] sm:$0xf]
    %v875 = vld [vmem:[#allocation13 + $0x18] sm:$0xf]
    %v876 = vld [vmem:[#allocation13 + $0x1c] sm:$0xf]
    %v877 = vld [vmem:[#allocation13 + $0x20] sm:$0xf]
    %v878 = vld [vmem:[#allocation13 + $0x24] sm:$0xf]
    %v879 = vld [vmem:[#allocation13 + $0x28] sm:$0xf]
    %v880 = vld [vmem:[#allocation13 + $0x2c] sm:$0xf]
    %v881 = vld [vmem:[#allocation13 + $0x30] sm:$0xf]
    %v882 = vld [vmem:[#allocation13 + $0x34] sm:$0xf]
    %v883 = vld [vmem:[#allocation13 + $0x38] sm:$0xf]
    %v884 = vld [vmem:[#allocation13 + $0x3c] sm:$0xf]
    %v885 = vld [vmem:[#allocation13 + $0x40] sm:$0xf]
    %v886 = vld [vmem:[#allocation13 + $0x44] sm:$0xf]
    %v887 = vld [vmem:[#allocation13 + $0x48] sm:$0xf]
    %v888 = vld [vmem:[#allocation13 + $0x4c] sm:$0xf]
    %v889 = vld [vmem:[#allocation13 + $0x50] sm:$0xf]
    %v890 = vld [vmem:[#allocation13 + $0x54] sm:$0xf]
    %v891 = vld [vmem:[#allocation13 + $0x58] sm:$0xf]
    %v892 = vld [vmem:[#allocation13 + $0x5c] sm:$0xf]
    %v893 = vld [vmem:[#allocation13 + $0x60] sm:$0xf]
    %v894 = vld [vmem:[#allocation13 + $0x64] sm:$0xf]
    %v895 = vld [vmem:[#allocation13 + $0x68] sm:$0xf]
    %v896 = vld [vmem:[#allocation13 + $0x6c] sm:$0xf]
    %v897 = vld [vmem:[#allocation13 + $0x70] sm:$0xf]
    %v898 = vld [vmem:[#allocation13 + $0x74] sm:$0xf]
    %v899 = vld [vmem:[#allocation13 + $0x78] sm:$0xf]
    %v900 = vld [vmem:[#allocation13 + $0x7c] sm:$0xf]
    %v901 = vld [vmem:[%s10] sm:$0x1]
    %v903 = vperm.slane %v901, 0
    %v937 = vunpack.c.l.b16 %v869
    %v938 = vunpack.c.l.b16 %v870
    %v939 = vunpack.c.l.b16 %v871
    %v940 = vunpack.c.l.b16 %v872
    %v941 = vunpack.c.l.b16 %v873
    %v942 = vunpack.c.l.b16 %v874
    %v943 = vunpack.c.l.b16 %v875
    %v944 = vunpack.c.l.b16 %v876
    %v945 = vunpack.c.l.b16 %v877
    %v946 = vunpack.c.l.b16 %v878
    %v947 = vunpack.c.l.b16 %v879
    %v948 = vunpack.c.l.b16 %v880
    %v949 = vunpack.c.l.b16 %v881
    %v950 = vunpack.c.l.b16 %v882
    %v951 = vunpack.c.l.b16 %v883
    %v952 = vunpack.c.l.b16 %v884
    %v953 = vunpack.c.l.b16 %v885
    %v954 = vunpack.c.l.b16 %v886
    %v955 = vunpack.c.l.b16 %v887
    %v956 = vunpack.c.l.b16 %v888
    %v957 = vunpack.c.l.b16 %v889
    %v958 = vunpack.c.l.b16 %v890
    %v959 = vunpack.c.l.b16 %v891
    %v960 = vunpack.c.l.b16 %v892
    %v961 = vunpack.c.l.b16 %v893
    %v962 = vunpack.c.l.b16 %v894
    %v963 = vunpack.c.l.b16 %v895
    %v964 = vunpack.c.l.b16 %v896
    %v965 = vunpack.c.l.b16 %v897
    %v966 = vunpack.c.l.b16 %v898
    %v967 = vunpack.c.l.b16 %v899
    %v968 = vunpack.c.l.b16 %v900
    %v969 = vpack.c.b16 %v938, %v937
    %v970 = vpack.c.b16 %v940, %v939
    %v971 = vpack.c.b16 %v942, %v941
    %v972 = vpack.c.b16 %v944, %v943
    %v973 = vpack.c.b16 %v946, %v945
    %v974 = vpack.c.b16 %v948, %v947
    %v975 = vpack.c.b16 %v950, %v949
    %v976 = vpack.c.b16 %v952, %v951
    %v977 = vpack.c.b16 %v954, %v953
    %v978 = vpack.c.b16 %v956, %v955
    %v979 = vpack.c.b16 %v958, %v957
    %v980 = vpack.c.b16 %v960, %v959
    %v981 = vpack.c.b16 %v962, %v961
    %v982 = vpack.c.b16 %v964, %v963
    %v983 = vpack.c.b16 %v966, %v965
    %v984 = vpack.c.b16 %v968, %v967
    %1001 = vmatpush.bf16.msra.mxu0 %v976
    %1002 = vmatpush.bf16.msra.mxu0 %v975
    %1003 = vmatpush.bf16.msra.mxu0 %v974
    %1004 = vmatpush.bf16.msra.mxu0 %v973
    %1005 = vmatpush.bf16.msra.mxu0 %v972
    %1006 = vmatpush.bf16.msra.mxu0 %v971
    %1007 = vmatpush.bf16.msra.mxu0 %v970
    %1008 = vmatpush.bf16.msra.mxu0 %v969
    %1009 = vmatmul.bf16.gmra.mxu0 %v867
    %v1010 = vpop.f32.mrf.mxu0
    %v1011 = vadd.f32 %v903, %v1010
    %v1012 = vpop.f32.mrf.mxu0
    %1013 = vdwg.mxu0
    %1014 = vmatpush.bf16.msra.mxu0 %v984
    %1015 = vmatpush.bf16.msra.mxu0 %v983
    %1016 = vmatpush.bf16.msra.mxu0 %v982
    %1017 = vmatpush.bf16.msra.mxu0 %v981
    %1018 = vmatpush.bf16.msra.mxu0 %v980
    %1019 = vmatpush.bf16.msra.mxu0 %v979
    %1020 = vmatpush.bf16.msra.mxu0 %v978
    %1021 = vmatpush.bf16.msra.mxu0 %v977
    %1022 = vmatmul.bf16.gmra.mxu0 %v868
    %v1023 = vpop.f32.mrf.mxu0
    %v1024 = vadd.f32 %v1011, %v1023
    %v1025 = vpop.f32.mrf.mxu0
    %1026 = vdwg.mxu0
    %1027 = vst [vmem:[#allocation14] sm:$0xff] %v1024
    // Predicated region
    $region74: #{tpu_custom_call.1} parent=1 // pred_check
      _
    $region75: #{tpu_custom_call.1} parent=1 // pred_check_branch
      %1029 = sbr.rel (0) target = $region77
    $region76: #{tpu_custom_call.1} parent=1 // pred_region
      %1031 = vsyncadd [#allocation4], 0
      %s1033 = sshll.u32 [#allocation14], 4
      %s1034 = int_to_ptr.vmem [resolvable:$true] %s1033
      %s1035 = sshll.u32 %s11, 4
      %s1036 = int_to_ptr.hbm [resolvable:$true] %s1035
      %1038 = dma.vmem_to_hbm [thread:$0]  %s1034, 128, %s1036, [#allocation4]
    $region77: #{tpu_custom_call.1} parent=1 // pred_fallthru
      _
    // Predicated region
    $region78: #{tpu_custom_call.1} parent=1 // pred_check
      _
    $region79: #{tpu_custom_call.1} parent=1 // pred_check_branch
      %1040 = sbr.rel (0) target = $region81
    $region80: #{tpu_custom_call.1} parent=1 // pred_region
      %1042 = dma.done [#allocation4], 128
    $region81: #{tpu_custom_call.1} parent=1 // pred_fallthru
      _
    %1043 = vsyncpa [#allocation3], 1
    %1044 = vsyncpa [#allocation6], 1
    %1045 = vsyncpa [#allocation9], 1
    %1046 = vsyncpa [#allocation12], 1
    %1047 = vsyncpa [#allocation4], 1

</llo_original>
